<compile_context>
chip_gen: v7x
topology: tpu7x:2x2x1
jax: 0.10.0
libtpu: 0.0.40
codegen_flags: <defaults>
</compile_context>

<pallas_src>
import functools

import jax
import jax.numpy as jnp
import numpy as np
from jax.experimental import pallas as pl
from jax.experimental.pallas import tpu as pltpu

BN_EPS = 1e-5


def _bn_train(x, gamma, beta):
    """BatchNorm1d in training mode (two-pass reference form)."""
    mean = jnp.mean(x, axis=0, keepdims=True)
    var = jnp.mean((x - mean) ** 2, axis=0, keepdims=True)
    return (x - mean) * jax.lax.rsqrt(var + BN_EPS) * gamma + beta


def _vae4x_kernel(batch, z_dim,
                  klmn_ref,                 # SMEM (4,) f32 : mixing scalars
                  x_ref,                    # VMEM (4B, 512)
                  w_enc_ref, b_enc_ref,     # (512, 2Z), (1, 2Z)   encode
                  g1_ref, be1_ref,          # (1, Z), (1, Z)       bn = BatchNorm1d(z)
                  w_d1_ref,                 # (Z, 512)             decode[0] (bias cancels)
                  g2_ref, be2_ref,          # (1, 512), (1, 512)   decode[1] BN
                  w_d2_ref, b_d2_ref,       # (512, 512), (1, 512) decode[3]
                  out_ref):                 # VMEM (B, 512)
    B, Z = batch, z_dim

    k = klmn_ref[0]
    l = klmn_ref[1]
    m = klmn_ref[2]
    n = klmn_ref[3]
    w_sum = k + l + m + n

    # ---- encode: ONE Linear(512, 2Z) on the concatenated (4B, 512) batch ---
    x = x_ref[...]
    he = jnp.dot(x, w_enc_ref[...], preferred_element_type=jnp.float32)  # (4B, 2Z)

    # Static lane slices (zero-cost when Z is a multiple of 128).  The encode
    # bias on the mu half is dropped: it is exactly cancelled by the mean
    # subtraction of the training-mode BatchNorm1d(z) below.
    mu = he[:, :Z]
    lv = he[:, Z:] + b_enc_ref[:, Z:]

    # ---- fused 4-stream BatchNorm1d(z) + klmn mix ---------------------------
    # (4B, Z) -> (4, B, Z): stream axis explicit, per-stream stats over axis=1.
    # Per-column coefficients a_i = w_i * gamma * rsqrt(var_i + eps) are
    # factored out of the (B, Z) work.
    mu3 = mu.reshape(4, B, Z)
    mean = jnp.mean(mu3, axis=1, keepdims=True)                 # (4, 1, Z)
    ex2 = jnp.mean(mu3 * mu3, axis=1, keepdims=True)            # (4, 1, Z)
    var = jnp.maximum(ex2 - mean * mean, 0.0)                   # single-pass var
    inv = jax.lax.rsqrt(var + BN_EPS)                           # (4, 1, Z)

    g1 = g1_ref[...]                                            # (1, Z)
    a0 = (k * g1) * inv[0]
    a1 = (l * g1) * inv[1]
    a2 = (m * g1) * inv[2]
    a3 = (n * g1) * inv[3]
    shift = (w_sum * be1_ref[...]
             - (a0 * mean[0] + a1 * mean[1] + a2 * mean[2] + a3 * mean[3]))
    mu_mix = a0 * mu3[0] + a1 * mu3[1] + a2 * mu3[2] + a3 * mu3[3] + shift

    # std_i = exp(logvar_i); var_i = std_i**2 = exp(2*logvar_i): one exp block
    ev = jnp.exp(2.0 * lv).reshape(4, B, Z)
    var_mix = k * ev[0] + l * ev[1] + m * ev[2] + n * ev[3]
    z_q = mu_mix + jnp.sqrt(var_mix)

    # ---- decode: Linear(z,512) -> BN(512) -> ReLU -> Linear(512,512) -------
    # decode[0] bias cancels in the BN mean subtraction -> not loaded at all.
    h1 = jnp.dot(z_q, w_d1_ref[...], preferred_element_type=jnp.float32)
    h_mean = jnp.mean(h1, axis=0, keepdims=True)
    hc = h1 - h_mean
    h_var = jnp.mean(hc * hc, axis=0, keepdims=True)            # two-pass var
    h1 = hc * jax.lax.rsqrt(h_var + BN_EPS) * g2_ref[...] + be2_ref[...]
    h1 = jnp.maximum(h1, 0.0)

    out = jnp.dot(h1, w_d2_ref[...], preferred_element_type=jnp.float32)
    out_ref[...] = out + b_d2_ref[...]


def vae_4x_forward(k, l, m, n, a, b, c, d, params):
    """Pallas implementation of VAE_4x.forward (training-mode batch norms)."""
    batch, cl, h = a.shape
    assert cl * h == 512, "Linear(512, ...) requires cl*h == 512"
    z_dim = params["g1"].shape[1]

    # glue: flatten + concatenate along the batch axis (dim=0 in PyTorch)
    x = jnp.concatenate([a.reshape(batch, -1), b.reshape(batch, -1),
                         c.reshape(batch, -1), d.reshape(batch, -1)], axis=0)
    x = x.astype(jnp.float32)
    klmn = jnp.asarray([k, l, m, n], dtype=jnp.float32)

    kernel = functools.partial(_vae4x_kernel, batch, z_dim)

    vmem = pl.BlockSpec(memory_space=pltpu.MemorySpace.VMEM)
    smem = pl.BlockSpec(memory_space=pltpu.MemorySpace.SMEM)

    operands = (klmn, x,
                params["w_enc"], params["b_enc"],
                params["g1"], params["be1"],
                params["w_d1"],
                params["g2"], params["be2"],
                params["w_d2"], params["b_d2"])

    in_bytes = sum(int(np.prod(t.shape)) * 4 for t in operands[1:])
    out_bytes = batch * 512 * 4
    # Live in-kernel intermediates: he/mu3/ev/mix at (4B, {Z, 2Z}) f32 plus
    # h1/out at (B, 512) f32.
    interm_bytes = 8 * (4 * batch) * z_dim * 4 + 3 * batch * 512 * 4
    vmem_limit = int(max(4 * 1024 * 1024,
                         2 * (in_bytes + out_bytes) + 2 * interm_bytes))

    flops = 2 * (4 * batch * 512 * (2 * z_dim)      # encode (single fused matmul)
                 + batch * z_dim * 512              # decode[0]
                 + batch * 512 * 512)               # decode[3]
    transcendentals = 4 * batch * z_dim             # exp on the (4B, Z) logvar

    out = pl.pallas_call(
        kernel,
        out_shape=jax.ShapeDtypeStruct((batch, 512), jnp.float32),
        in_specs=[smem] + [vmem] * 10,
        out_specs=vmem,
        compiler_params=pltpu.CompilerParams(vmem_limit_bytes=vmem_limit),
        cost_estimate=pl.CostEstimate(flops=flops,
                                      transcendentals=transcendentals,
                                      bytes_accessed=in_bytes + out_bytes),
    )(*operands)

    return out.reshape(batch, cl, h)


def init_params(key, z_dim):
    """Deterministic init matching PyTorch shapes (weights stored transposed:
    (in, out) so the kernel computes x @ W)."""
    ks = jax.random.split(key, 6)

    def lin(kk, fan_in, fan_out):
        bound = 1.0 / np.sqrt(fan_in)
        kw, kb = jax.random.split(kk)
        w = jax.random.uniform(kw, (fan_in, fan_out), jnp.float32, -bound, bound)
        b = jax.random.uniform(kb, (1, fan_out), jnp.float32, -bound, bound)
        return w, b

    w_enc, b_enc = lin(ks[0], 512, 2 * z_dim)     # encode: Linear(512, 2z)
    w_d1, b_d1 = lin(ks[1], z_dim, 512)           # decode[0]: Linear(z, 512)
    w_d2, b_d2 = lin(ks[2], 512, 512)             # decode[3]: Linear(512, 512)

    return {
        "w_enc": w_enc, "b_enc": b_enc,
        "g1": jnp.ones((1, z_dim), jnp.float32),   # bn = BatchNorm1d(z_dim)
        "be1": jnp.zeros((1, z_dim), jnp.float32),
        "w_d1": w_d1, "b_d1": b_d1,                # b_d1 used by reference only
        "g2": jnp.ones((1, 512), jnp.float32),     # decode[1] = BatchNorm1d(512)
        "be2": jnp.zeros((1, 512), jnp.float32),
        "w_d2": w_d2, "b_d2": b_d2,
    }


def vae_4x_reference(k, l, m, n, a, b, c, d, params):
    """Pure-JAX reference mirroring the PyTorch forward (training-mode BN),
    including both biases — validates the in-kernel bias cancellation."""
    batch, cl, h = a.shape
    z_dim = params["g1"].shape[1]
    x = jnp.concatenate([a.reshape(batch, -1), b.reshape(batch, -1),
                         c.reshape(batch, -1), d.reshape(batch, -1)], axis=0)
    he = x @ params["w_enc"] + params["b_enc"]
    mu, logvar = he[:, :z_dim], he[:, z_dim:]
    mus = jnp.split(mu, 4, axis=0)
    lvs = jnp.split(logvar, 4, axis=0)
    bn1 = lambda t: _bn_train(t, params["g1"], params["be1"])
    w = [k, l, m, n]
    mu_mix = sum(wi * bn1(mi) for wi, mi in zip(w, mus))
    var_mix = sum(wi * jnp.exp(2.0 * li) for wi, li in zip(w, lvs))
    z_q = mu_mix + jnp.sqrt(var_mix)
    h1 = z_q @ params["w_d1"] + params["b_d1"]
    h1 = jnp.maximum(_bn_train(h1, params["g2"], params["be2"]), 0.0)
    out = h1 @ params["w_d2"] + params["b_d2"]
    return out.reshape(batch, cl, h)


if __name__ == "__main__":
    z_dim = 128
    batch, cl, h = 8, 4, 128          # cl * h == 512; batch multiple of 8

    key = jax.random.PRNGKey(0)
    kp, ka, kb, kc, kd = jax.random.split(key, 5)
    params = init_params(kp, z_dim)

    a = jax.random.normal(ka, (batch, cl, h), jnp.float32)
    b = jax.random.normal(kb, (batch, cl, h), jnp.float32)
    c = jax.random.normal(kc, (batch, cl, h), jnp.float32)
    d = jax.random.normal(kd, (batch, cl, h), jnp.float32)
    k_, l_, m_, n_ = 0.1, 0.2, 0.3, 0.4

    out = vae_4x_forward(k_, l_, m_, n_, a, b, c, d, params)
    out = jax.block_until_ready(out)

    ref = vae_4x_reference(k_, l_, m_, n_, a, b, c, d, params)
    np.testing.assert_allclose(np.asarray(out), np.asarray(ref),
                               rtol=2e-4, atol=2e-4)
    assert out.shape == (batch, cl, h)
    print("KERNEL_OK")
</pallas_src>

<mosaic_0001>
module attributes {stable_mosaic.version = 11 : i64} {
  func.func @_vae4x_kernel(%arg0: memref<4xf32, #tpu.memory_space<smem>>, %arg1: memref<32x512xf32, #tpu.memory_space<vmem>>, %arg2: memref<512x256xf32, #tpu.memory_space<vmem>>, %arg3: memref<1x256xf32, #tpu.memory_space<vmem>>, %arg4: memref<1x128xf32, #tpu.memory_space<vmem>>, %arg5: memref<1x128xf32, #tpu.memory_space<vmem>>, %arg6: memref<128x512xf32, #tpu.memory_space<vmem>>, %arg7: memref<1x512xf32, #tpu.memory_space<vmem>>, %arg8: memref<1x512xf32, #tpu.memory_space<vmem>>, %arg9: memref<512x512xf32, #tpu.memory_space<vmem>>, %arg10: memref<1x512xf32, #tpu.memory_space<vmem>>, %arg11: memref<8x512xf32, #tpu.memory_space<vmem>>) attributes {dimension_semantics = [], scalar_prefetch = 0 : i64, scratch_operands = 0 : i64, tpu.core_type = #tpu.core_type<tc>} {
    %c0 = arith.constant 0 : index
    %0 = memref.load %arg0[%c0] : memref<4xf32, #tpu.memory_space<smem>>
    %c1 = arith.constant 1 : index
    %1 = memref.load %arg0[%c1] : memref<4xf32, #tpu.memory_space<smem>>
    %c2 = arith.constant 2 : index
    %2 = memref.load %arg0[%c2] : memref<4xf32, #tpu.memory_space<smem>>
    %c3 = arith.constant 3 : index
    %3 = memref.load %arg0[%c3] : memref<4xf32, #tpu.memory_space<smem>>
    %4 = arith.addf %0, %1 : f32
    %5 = arith.addf %4, %2 : f32
    %6 = arith.addf %5, %3 : f32
    %c0_0 = arith.constant 0 : index
    %c0_1 = arith.constant 0 : index
    %7 = vector.load %arg1[%c0_0, %c0_1] : memref<32x512xf32, #tpu.memory_space<vmem>>, vector<32x512xf32>
    %c0_2 = arith.constant 0 : index
    %c0_3 = arith.constant 0 : index
    %8 = vector.load %arg2[%c0_2, %c0_3] : memref<512x256xf32, #tpu.memory_space<vmem>>, vector<512x256xf32>
    %cst = arith.constant dense<0.000000e+00> : vector<32x256xf32>
    %9 = tpu.matmul %7, %8, %cst {dimension_numbers = #tpu.dot_dimension_numbers<[1], [0], [0], [1], [0, 0, 1, 1], [], []>} : vector<32x512xf32>, vector<512x256xf32>, vector<32x256xf32> -> vector<32x256xf32>
    %10 = vector.extract_strided_slice %9 {offsets = [0, 0], sizes = [32, 128], strides = [1, 1]} : vector<32x256xf32> to vector<32x128xf32>
    %11 = vector.extract_strided_slice %9 {offsets = [0, 128], sizes = [32, 128], strides = [1, 1]} : vector<32x256xf32> to vector<32x128xf32>
    %c0_4 = arith.constant 0 : index
    %c128 = arith.constant 128 : index
    %12 = vector.load %arg3[%c0_4, %c128] : memref<1x256xf32, #tpu.memory_space<vmem>>, vector<1x128xf32>
    %13 = vector.broadcast %12 : vector<1x128xf32> to vector<32x128xf32>
    %14 = arith.addf %11, %13 : vector<32x128xf32>
    %15 = vector.shape_cast %10 : vector<32x128xf32> to vector<4x8x128xf32>
    %cst_5 = arith.constant dense<0.000000e+00> : vector<4x128xf32>
    %16 = vector.multi_reduction <add>, %15, %cst_5 [1] : vector<4x8x128xf32> to vector<4x128xf32>
    %17 = vector.shape_cast %16 : vector<4x128xf32> to vector<4x1x128xf32>
    %cst_6 = arith.constant 8.000000e+00 : f32
    %18 = vector.broadcast %cst_6 : f32 to vector<4x1x128xf32>
    %19 = arith.divf %17, %18 : vector<4x1x128xf32>
    %20 = arith.mulf %15, %15 : vector<4x8x128xf32>
    %cst_7 = arith.constant dense<0.000000e+00> : vector<4x128xf32>
    %21 = vector.multi_reduction <add>, %20, %cst_7 [1] : vector<4x8x128xf32> to vector<4x128xf32>
    %22 = vector.shape_cast %21 : vector<4x128xf32> to vector<4x1x128xf32>
    %cst_8 = arith.constant 8.000000e+00 : f32
    %23 = vector.broadcast %cst_8 : f32 to vector<4x1x128xf32>
    %24 = arith.divf %22, %23 : vector<4x1x128xf32>
    %25 = arith.mulf %19, %19 : vector<4x1x128xf32>
    %26 = arith.subf %24, %25 : vector<4x1x128xf32>
    %cst_9 = arith.constant 0.000000e+00 : f32
    %27 = vector.broadcast %cst_9 : f32 to vector<4x1x128xf32>
    %28 = arith.maximumf %26, %27 : vector<4x1x128xf32>
    %cst_10 = arith.constant 9.99999974E-6 : f32
    %29 = vector.broadcast %cst_10 : f32 to vector<4x1x128xf32>
    %30 = arith.addf %28, %29 : vector<4x1x128xf32>
    %31 = math.rsqrt %30 : vector<4x1x128xf32>
    %c0_11 = arith.constant 0 : index
    %c0_12 = arith.constant 0 : index
    %32 = vector.load %arg4[%c0_11, %c0_12] : memref<1x128xf32, #tpu.memory_space<vmem>>, vector<1x128xf32>
    %33 = vector.broadcast %0 : f32 to vector<1x128xf32>
    %34 = arith.mulf %33, %32 : vector<1x128xf32>
    %35 = vector.extract_strided_slice %31 {offsets = [0, 0, 0], sizes = [1, 1, 128], strides = [1, 1, 1]} : vector<4x1x128xf32> to vector<1x1x128xf32>
    %36 = vector.shape_cast %35 : vector<1x1x128xf32> to vector<1x128xf32>
    %37 = arith.mulf %34, %36 : vector<1x128xf32>
    %38 = vector.broadcast %1 : f32 to vector<1x128xf32>
    %39 = arith.mulf %38, %32 : vector<1x128xf32>
    %40 = vector.extract_strided_slice %31 {offsets = [1, 0, 0], sizes = [1, 1, 128], strides = [1, 1, 1]} : vector<4x1x128xf32> to vector<1x1x128xf32>
    %41 = vector.shape_cast %40 : vector<1x1x128xf32> to vector<1x128xf32>
    %42 = arith.mulf %39, %41 : vector<1x128xf32>
    %43 = vector.broadcast %2 : f32 to vector<1x128xf32>
    %44 = arith.mulf %43, %32 : vector<1x128xf32>
    %45 = vector.extract_strided_slice %31 {offsets = [2, 0, 0], sizes = [1, 1, 128], strides = [1, 1, 1]} : vector<4x1x128xf32> to vector<1x1x128xf32>
    %46 = vector.shape_cast %45 : vector<1x1x128xf32> to vector<1x128xf32>
    %47 = arith.mulf %44, %46 : vector<1x128xf32>
    %48 = vector.broadcast %3 : f32 to vector<1x128xf32>
    %49 = arith.mulf %48, %32 : vector<1x128xf32>
    %50 = vector.extract_strided_slice %31 {offsets = [3, 0, 0], sizes = [1, 1, 128], strides = [1, 1, 1]} : vector<4x1x128xf32> to vector<1x1x128xf32>
    %51 = vector.shape_cast %50 : vector<1x1x128xf32> to vector<1x128xf32>
    %52 = arith.mulf %49, %51 : vector<1x128xf32>
    %c0_13 = arith.constant 0 : index
    %c0_14 = arith.constant 0 : index
    %53 = vector.load %arg5[%c0_13, %c0_14] : memref<1x128xf32, #tpu.memory_space<vmem>>, vector<1x128xf32>
    %54 = vector.broadcast %6 : f32 to vector<1x128xf32>
    %55 = arith.mulf %54, %53 : vector<1x128xf32>
    %56 = vector.extract_strided_slice %19 {offsets = [0, 0, 0], sizes = [1, 1, 128], strides = [1, 1, 1]} : vector<4x1x128xf32> to vector<1x1x128xf32>
    %57 = vector.shape_cast %56 : vector<1x1x128xf32> to vector<1x128xf32>
    %58 = arith.mulf %37, %57 : vector<1x128xf32>
    %59 = vector.extract_strided_slice %19 {offsets = [1, 0, 0], sizes = [1, 1, 128], strides = [1, 1, 1]} : vector<4x1x128xf32> to vector<1x1x128xf32>
    %60 = vector.shape_cast %59 : vector<1x1x128xf32> to vector<1x128xf32>
    %61 = arith.mulf %42, %60 : vector<1x128xf32>
    %62 = arith.addf %58, %61 : vector<1x128xf32>
    %63 = vector.extract_strided_slice %19 {offsets = [2, 0, 0], sizes = [1, 1, 128], strides = [1, 1, 1]} : vector<4x1x128xf32> to vector<1x1x128xf32>
    %64 = vector.shape_cast %63 : vector<1x1x128xf32> to vector<1x128xf32>
    %65 = arith.mulf %47, %64 : vector<1x128xf32>
    %66 = arith.addf %62, %65 : vector<1x128xf32>
    %67 = vector.extract_strided_slice %19 {offsets = [3, 0, 0], sizes = [1, 1, 128], strides = [1, 1, 1]} : vector<4x1x128xf32> to vector<1x1x128xf32>
    %68 = vector.shape_cast %67 : vector<1x1x128xf32> to vector<1x128xf32>
    %69 = arith.mulf %52, %68 : vector<1x128xf32>
    %70 = arith.addf %66, %69 : vector<1x128xf32>
    %71 = arith.subf %55, %70 : vector<1x128xf32>
    %72 = vector.extract_strided_slice %15 {offsets = [0, 0, 0], sizes = [1, 8, 128], strides = [1, 1, 1]} : vector<4x8x128xf32> to vector<1x8x128xf32>
    %73 = vector.shape_cast %72 : vector<1x8x128xf32> to vector<8x128xf32>
    %74 = vector.broadcast %37 : vector<1x128xf32> to vector<8x128xf32>
    %75 = arith.mulf %74, %73 : vector<8x128xf32>
    %76 = vector.extract_strided_slice %15 {offsets = [1, 0, 0], sizes = [1, 8, 128], strides = [1, 1, 1]} : vector<4x8x128xf32> to vector<1x8x128xf32>
    %77 = vector.shape_cast %76 : vector<1x8x128xf32> to vector<8x128xf32>
    %78 = vector.broadcast %42 : vector<1x128xf32> to vector<8x128xf32>
    %79 = arith.mulf %78, %77 : vector<8x128xf32>
    %80 = arith.addf %75, %79 : vector<8x128xf32>
    %81 = vector.extract_strided_slice %15 {offsets = [2, 0, 0], sizes = [1, 8, 128], strides = [1, 1, 1]} : vector<4x8x128xf32> to vector<1x8x128xf32>
    %82 = vector.shape_cast %81 : vector<1x8x128xf32> to vector<8x128xf32>
    %83 = vector.broadcast %47 : vector<1x128xf32> to vector<8x128xf32>
    %84 = arith.mulf %83, %82 : vector<8x128xf32>
    %85 = arith.addf %80, %84 : vector<8x128xf32>
    %86 = vector.extract_strided_slice %15 {offsets = [3, 0, 0], sizes = [1, 8, 128], strides = [1, 1, 1]} : vector<4x8x128xf32> to vector<1x8x128xf32>
    %87 = vector.shape_cast %86 : vector<1x8x128xf32> to vector<8x128xf32>
    %88 = vector.broadcast %52 : vector<1x128xf32> to vector<8x128xf32>
    %89 = arith.mulf %88, %87 : vector<8x128xf32>
    %90 = arith.addf %85, %89 : vector<8x128xf32>
    %91 = vector.broadcast %71 : vector<1x128xf32> to vector<8x128xf32>
    %92 = arith.addf %90, %91 : vector<8x128xf32>
    %cst_15 = arith.constant 2.000000e+00 : f32
    %93 = vector.broadcast %cst_15 : f32 to vector<32x128xf32>
    %94 = arith.mulf %93, %14 : vector<32x128xf32>
    %95 = math.exp %94 : vector<32x128xf32>
    %96 = vector.shape_cast %95 : vector<32x128xf32> to vector<4x8x128xf32>
    %97 = vector.extract_strided_slice %96 {offsets = [0, 0, 0], sizes = [1, 8, 128], strides = [1, 1, 1]} : vector<4x8x128xf32> to vector<1x8x128xf32>
    %98 = vector.shape_cast %97 : vector<1x8x128xf32> to vector<8x128xf32>
    %99 = vector.broadcast %0 : f32 to vector<8x128xf32>
    %100 = arith.mulf %99, %98 : vector<8x128xf32>
    %101 = vector.extract_strided_slice %96 {offsets = [1, 0, 0], sizes = [1, 8, 128], strides = [1, 1, 1]} : vector<4x8x128xf32> to vector<1x8x128xf32>
    %102 = vector.shape_cast %101 : vector<1x8x128xf32> to vector<8x128xf32>
    %103 = vector.broadcast %1 : f32 to vector<8x128xf32>
    %104 = arith.mulf %103, %102 : vector<8x128xf32>
    %105 = arith.addf %100, %104 : vector<8x128xf32>
    %106 = vector.extract_strided_slice %96 {offsets = [2, 0, 0], sizes = [1, 8, 128], strides = [1, 1, 1]} : vector<4x8x128xf32> to vector<1x8x128xf32>
    %107 = vector.shape_cast %106 : vector<1x8x128xf32> to vector<8x128xf32>
    %108 = vector.broadcast %2 : f32 to vector<8x128xf32>
    %109 = arith.mulf %108, %107 : vector<8x128xf32>
    %110 = arith.addf %105, %109 : vector<8x128xf32>
    %111 = vector.extract_strided_slice %96 {offsets = [3, 0, 0], sizes = [1, 8, 128], strides = [1, 1, 1]} : vector<4x8x128xf32> to vector<1x8x128xf32>
    %112 = vector.shape_cast %111 : vector<1x8x128xf32> to vector<8x128xf32>
    %113 = vector.broadcast %3 : f32 to vector<8x128xf32>
    %114 = arith.mulf %113, %112 : vector<8x128xf32>
    %115 = arith.addf %110, %114 : vector<8x128xf32>
    %116 = math.sqrt %115 : vector<8x128xf32>
    %117 = arith.addf %92, %116 : vector<8x128xf32>
    %c0_16 = arith.constant 0 : index
    %c0_17 = arith.constant 0 : index
    %118 = vector.load %arg6[%c0_16, %c0_17] : memref<128x512xf32, #tpu.memory_space<vmem>>, vector<128x512xf32>
    %cst_18 = arith.constant dense<0.000000e+00> : vector<8x512xf32>
    %119 = tpu.matmul %117, %118, %cst_18 {dimension_numbers = #tpu.dot_dimension_numbers<[1], [0], [0], [1], [0, 0, 1, 1], [], []>} : vector<8x128xf32>, vector<128x512xf32>, vector<8x512xf32> -> vector<8x512xf32>
    %cst_19 = arith.constant dense<0.000000e+00> : vector<512xf32>
    %120 = vector.multi_reduction <add>, %119, %cst_19 [0] : vector<8x512xf32> to vector<512xf32>
    %121 = vector.shape_cast %120 : vector<512xf32> to vector<1x512xf32>
    %cst_20 = arith.constant 8.000000e+00 : f32
    %122 = vector.broadcast %cst_20 : f32 to vector<1x512xf32>
    %123 = arith.divf %121, %122 : vector<1x512xf32>
    %124 = vector.broadcast %123 : vector<1x512xf32> to vector<8x512xf32>
    %125 = arith.subf %119, %124 : vector<8x512xf32>
    %126 = arith.mulf %125, %125 : vector<8x512xf32>
    %cst_21 = arith.constant dense<0.000000e+00> : vector<512xf32>
    %127 = vector.multi_reduction <add>, %126, %cst_21 [0] : vector<8x512xf32> to vector<512xf32>
    %128 = vector.shape_cast %127 : vector<512xf32> to vector<1x512xf32>
    %cst_22 = arith.constant 8.000000e+00 : f32
    %129 = vector.broadcast %cst_22 : f32 to vector<1x512xf32>
    %130 = arith.divf %128, %129 : vector<1x512xf32>
    %cst_23 = arith.constant 9.99999974E-6 : f32
    %131 = vector.broadcast %cst_23 : f32 to vector<1x512xf32>
    %132 = arith.addf %130, %131 : vector<1x512xf32>
    %133 = math.rsqrt %132 : vector<1x512xf32>
    %134 = vector.broadcast %133 : vector<1x512xf32> to vector<8x512xf32>
    %135 = arith.mulf %125, %134 : vector<8x512xf32>
    %c0_24 = arith.constant 0 : index
    %c0_25 = arith.constant 0 : index
    %136 = vector.load %arg7[%c0_24, %c0_25] : memref<1x512xf32, #tpu.memory_space<vmem>>, vector<1x512xf32>
    %137 = vector.broadcast %136 : vector<1x512xf32> to vector<8x512xf32>
    %138 = arith.mulf %135, %137 : vector<8x512xf32>
    %c0_26 = arith.constant 0 : index
    %c0_27 = arith.constant 0 : index
    %139 = vector.load %arg8[%c0_26, %c0_27] : memref<1x512xf32, #tpu.memory_space<vmem>>, vector<1x512xf32>
    %140 = vector.broadcast %139 : vector<1x512xf32> to vector<8x512xf32>
    %141 = arith.addf %138, %140 : vector<8x512xf32>
    %cst_28 = arith.constant 0.000000e+00 : f32
    %142 = vector.broadcast %cst_28 : f32 to vector<8x512xf32>
    %143 = arith.maximumf %141, %142 : vector<8x512xf32>
    %c0_29 = arith.constant 0 : index
    %c0_30 = arith.constant 0 : index
    %144 = vector.load %arg9[%c0_29, %c0_30] : memref<512x512xf32, #tpu.memory_space<vmem>>, vector<512x512xf32>
    %cst_31 = arith.constant dense<0.000000e+00> : vector<8x512xf32>
    %145 = tpu.matmul %143, %144, %cst_31 {dimension_numbers = #tpu.dot_dimension_numbers<[1], [0], [0], [1], [0, 0, 1, 1], [], []>} : vector<8x512xf32>, vector<512x512xf32>, vector<8x512xf32> -> vector<8x512xf32>
    %c0_32 = arith.constant 0 : index
    %c0_33 = arith.constant 0 : index
    %146 = vector.load %arg10[%c0_32, %c0_33] : memref<1x512xf32, #tpu.memory_space<vmem>>, vector<1x512xf32>
    %147 = vector.broadcast %146 : vector<1x512xf32> to vector<8x512xf32>
    %148 = arith.addf %145, %147 : vector<8x512xf32>
    %c0_34 = arith.constant 0 : index
    %c0_35 = arith.constant 0 : index
    %149 = vector.load %arg11[%c0_34, %c0_35] : memref<8x512xf32, #tpu.memory_space<vmem>>, vector<8x512xf32>
    tpu.vector_store %arg11[%c0_34, %c0_35], %148 {strides = array<i32>} : memref<8x512xf32, #tpu.memory_space<vmem>>, vector<8x512xf32>,
    return
  }
}

</mosaic_0001>

<llo_original>
// kernel: tpu_custom_call.1
$region0: #{tpu_custom_call.1}
  #allocation0 [shape = 'u32[]', space=smem, size = 0x4, offset = 0x4, fixed_abs, tag = 'smem constant byte address 0x4 - core index']
  #allocation1 [shape = 'u32[144,128]{1,0:T(1,128)}', space=vmem, size = 0x12000, scoped, tag = 'internal scratch']
  %s0 = inlined_call_operand.hbm [shape: f32[4], index: 0, kind: input, shape index: {}]
  %s1 = inlined_call_operand.hbm [shape: f32[32,512], index: 1, kind: input, shape index: {}]
  %s2 = inlined_call_operand.hbm [shape: f32[512,256], index: 2, kind: input, shape index: {}]
  %s3 = inlined_call_operand.vmem [shape: f32[1,256], index: 3, kind: input, shape index: {}]
  %s4 = inlined_call_operand.vmem [shape: f32[1,128], index: 4, kind: input, shape index: {}]
  %s5 = inlined_call_operand.vmem [shape: f32[1,128], index: 5, kind: input, shape index: {}]
  %s6 = inlined_call_operand.hbm [shape: f32[128,512], index: 6, kind: input, shape index: {}]
  %s7 = inlined_call_operand.vmem [shape: f32[1,512], index: 7, kind: input, shape index: {}]
  %s8 = inlined_call_operand.vmem [shape: f32[1,512], index: 8, kind: input, shape index: {}]
  %s9 = inlined_call_operand.hbm [shape: f32[512,512], index: 9, kind: input, shape index: {}]
  %s10 = inlined_call_operand.vmem [shape: f32[1,512], index: 10, kind: input, shape index: {}]
  %s11 = inlined_call_operand.hbm [shape: f32[8,512], index: 11, kind: output, shape index: {}]
  %s12 = sld [smem:[#allocation0]]
  $region74: #{tpu_custom_call.1} parent=0
    _
  %s14 = ssub.s32 1, %s12
  %s15 = scalar_select 0, %s14, %s12
  $region1: #{tpu_custom_call.1} parent=0
    #allocation2 [shape = 'u8[512]{0}', space=smem, size = 0x200, scoped, tag = 'input window, operand 0, single buffered']
    #allocation3 [shape = 's32[1]{0}', space=sflag, size = 0x4, scoped, tag = 'scoped memory for tpu_custom_call.1']
    #allocation4 [shape = 's32[1]{0}', space=sflag, size = 0x4, scoped, tag = 'scoped memory for tpu_custom_call.1']
    #allocation5 [shape = 's32[1]{0}', space=sflag, size = 0x4, scoped, tag = 'scoped memory for tpu_custom_call.1']
    #allocation6 [shape = 'u8[65536]{0}', space=vmem, size = 0x10000, scoped, tag = 'input window, operand 1, single buffered']
    #allocation7 [shape = 'u8[524288]{0}', space=vmem, size = 0x80000, scoped, tag = 'input window, operand 2, single buffered']
    #allocation8 [shape = 's32[1]{0}', space=sflag, size = 0x4, scoped, tag = 'scoped memory for tpu_custom_call.1']
    #allocation9 [shape = 'u8[262144]{0}', space=vmem, size = 0x40000, scoped, tag = 'input window, operand 6, single buffered']
    #allocation10 [shape = 'u8[1048576]{0}', space=vmem, size = 0x100000, scoped, tag = 'input window, operand 9, single buffered']
    #allocation11 [shape = 's32[1]{0}', space=sflag, size = 0x4, scoped, tag = 'scoped memory for tpu_custom_call.1']
    #allocation12 [shape = 'u8[16384]{0}', space=vmem, size = 0x4000, scoped, tag = 'output window, operand 0, single buffered']
    %16 = vsyncpa [#allocation5], 0
    %17 = vsyncpa [#allocation3], 0
    %18 = vsyncpa [#allocation8], 0
    %19 = vsyncpa [#allocation11], 0
    %20 = vsyncpa [#allocation4], 0
    // Predicated region
    $region2: #{tpu_custom_call.1} parent=1 // pred_check
      _
    $region3: #{tpu_custom_call.1} parent=1 // pred_check_branch
      %22 = sbr.rel (0) target = $region5
    $region4: #{tpu_custom_call.1} parent=1 // pred_region
      %s24 = ssub.s32 16, 16
      %25 = vsyncadd [#allocation5], %s24
      %28 = dma.hbm_to_smem %s0, 16, [#allocation2], [#allocation5]
    $region5: #{tpu_custom_call.1} parent=1 // pred_fallthru
      _
    // Predicated region
    $region6: #{tpu_custom_call.1} parent=1 // pred_check
      _
    $region7: #{tpu_custom_call.1} parent=1 // pred_check_branch
      %30 = sbr.rel (0) target = $region9
    $region8: #{tpu_custom_call.1} parent=1 // pred_region
      %s32 = ssub.s32 2048, 2048
      %33 = vsyncadd [#allocation3], %s32
      %s34 = sshll.u32 [#allocation6], 4
      %s35 = int_to_ptr.vmem [resolvable:$true] %s34
      %40 = dma.hbm_to_vmem [thread:$0]  %s1, 2048, %s35, [#allocation3], 512, 512, 32
    $region9: #{tpu_custom_call.1} parent=1 // pred_fallthru
      _
    // Predicated region
    $region10: #{tpu_custom_call.1} parent=1 // pred_check
      _
    $region11: #{tpu_custom_call.1} parent=1 // pred_check_branch
      %42 = sbr.rel (0) target = $region13
    $region12: #{tpu_custom_call.1} parent=1 // pred_region
      %s44 = ssub.s32 16384, 16384
      %45 = vsyncadd [#allocation8], %s44
      %s46 = sshll.u32 [#allocation7], 4
      %s47 = int_to_ptr.vmem [resolvable:$true] %s46
      %52 = dma.hbm_to_vmem [thread:$0]  %s2, 16384, %s47, [#allocation8], 256, 256, 16
    $region13: #{tpu_custom_call.1} parent=1 // pred_fallthru
      _
    // Predicated region
    $region14: #{tpu_custom_call.1} parent=1 // pred_check
      _
    $region15: #{tpu_custom_call.1} parent=1 // pred_check_branch
      %54 = sbr.rel (0) target = $region17
    $region16: #{tpu_custom_call.1} parent=1 // pred_region
      _
    $region17: #{tpu_custom_call.1} parent=1 // pred_fallthru
      _
    // Predicated region
    $region18: #{tpu_custom_call.1} parent=1 // pred_check
      _
    $region19: #{tpu_custom_call.1} parent=1 // pred_check_branch
      %56 = sbr.rel (0) target = $region21
    $region20: #{tpu_custom_call.1} parent=1 // pred_region
      _
    $region21: #{tpu_custom_call.1} parent=1 // pred_fallthru
      _
    // Predicated region
    $region22: #{tpu_custom_call.1} parent=1 // pred_check
      _
    $region23: #{tpu_custom_call.1} parent=1 // pred_check_branch
      %58 = sbr.rel (0) target = $region25
    $region24: #{tpu_custom_call.1} parent=1 // pred_region
      _
    $region25: #{tpu_custom_call.1} parent=1 // pred_fallthru
      _
    // Predicated region
    $region26: #{tpu_custom_call.1} parent=1 // pred_check
      _
    $region27: #{tpu_custom_call.1} parent=1 // pred_check_branch
      %60 = sbr.rel (0) target = $region29
    $region28: #{tpu_custom_call.1} parent=1 // pred_region
      %s62 = ssub.s32 8192, 8192
      %63 = vsyncadd [#allocation8], %s62
      %s64 = sshll.u32 [#allocation9], 4
      %s65 = int_to_ptr.vmem [resolvable:$true] %s64
      %70 = dma.hbm_to_vmem [thread:$0]  %s6, 8192, %s65, [#allocation8], 512, 512, 32
    $region29: #{tpu_custom_call.1} parent=1 // pred_fallthru
      _
    // Predicated region
    $region30: #{tpu_custom_call.1} parent=1 // pred_check
      _
    $region31: #{tpu_custom_call.1} parent=1 // pred_check_branch
      %72 = sbr.rel (0) target = $region33
    $region32: #{tpu_custom_call.1} parent=1 // pred_region
      _
    $region33: #{tpu_custom_call.1} parent=1 // pred_fallthru
      _
    // Predicated region
    $region34: #{tpu_custom_call.1} parent=1 // pred_check
      _
    $region35: #{tpu_custom_call.1} parent=1 // pred_check_branch
      %74 = sbr.rel (0) target = $region37
    $region36: #{tpu_custom_call.1} parent=1 // pred_region
      _
    $region37: #{tpu_custom_call.1} parent=1 // pred_fallthru
      _
    // Predicated region
    $region38: #{tpu_custom_call.1} parent=1 // pred_check
      _
    $region39: #{tpu_custom_call.1} parent=1 // pred_check_branch
      %76 = sbr.rel (0) target = $region41
    $region40: #{tpu_custom_call.1} parent=1 // pred_region
      %s78 = ssub.s32 32768, 32768
      %79 = vsyncadd [#allocation11], %s78
      %s80 = sshll.u32 [#allocation10], 4
      %s81 = int_to_ptr.vmem [resolvable:$true] %s80
      %86 = dma.hbm_to_vmem [thread:$0]  %s9, 32768, %s81, [#allocation11], 512, 512, 32
    $region41: #{tpu_custom_call.1} parent=1 // pred_fallthru
      _
    // Predicated region
    $region42: #{tpu_custom_call.1} parent=1 // pred_check
      _
    $region43: #{tpu_custom_call.1} parent=1 // pred_check_branch
      %88 = sbr.rel (0) target = $region45
    $region44: #{tpu_custom_call.1} parent=1 // pred_region
      _
    $region45: #{tpu_custom_call.1} parent=1 // pred_fallthru
      _
    // Predicated region
    $region46: #{tpu_custom_call.1} parent=1 // pred_check
      _
    $region47: #{tpu_custom_call.1} parent=1 // pred_check_branch
      %90 = sbr.rel (0) target = $region49
    $region48: #{tpu_custom_call.1} parent=1 // pred_region
      %91 = dma.done [#allocation5], 16
    $region49: #{tpu_custom_call.1} parent=1 // pred_fallthru
      _
    // Predicated region
    $region50: #{tpu_custom_call.1} parent=1 // pred_check
      _
    $region51: #{tpu_custom_call.1} parent=1 // pred_check_branch
      %93 = sbr.rel (0) target = $region53
    $region52: #{tpu_custom_call.1} parent=1 // pred_region
      %94 = dma.done [#allocation3], 2048
    $region53: #{tpu_custom_call.1} parent=1 // pred_fallthru
      _
    // Predicated region
    $region54: #{tpu_custom_call.1} parent=1 // pred_check
      _
    $region55: #{tpu_custom_call.1} parent=1 // pred_check_branch
      %96 = sbr.rel (0) target = $region57
    $region56: #{tpu_custom_call.1} parent=1 // pred_region
      %97 = dma.done [#allocation8], 16384
    $region57: #{tpu_custom_call.1} parent=1 // pred_fallthru
      _
    // Predicated region
    $region58: #{tpu_custom_call.1} parent=1 // pred_check
      _
    $region59: #{tpu_custom_call.1} parent=1 // pred_check_branch
      %99 = sbr.rel (0) target = $region61
    $region60: #{tpu_custom_call.1} parent=1 // pred_region
      %100 = dma.done [#allocation8], 8192
    $region61: #{tpu_custom_call.1} parent=1 // pred_fallthru
      _
    // Predicated region
    $region62: #{tpu_custom_call.1} parent=1 // pred_check
      _
    $region63: #{tpu_custom_call.1} parent=1 // pred_check_branch
      %102 = sbr.rel (0) target = $region65
    $region64: #{tpu_custom_call.1} parent=1 // pred_region
      %103 = dma.done [#allocation11], 32768
    $region65: #{tpu_custom_call.1} parent=1 // pred_fallthru
      _
    %104 = sfence
    %s105 = sld [smem:[#allocation2]]
    %s106 = sld [smem:[#allocation2 + $0x1]]
    %s107 = sld [smem:[#allocation2 + $0x2]]
    %s108 = sld [smem:[#allocation2 + $0x3]]
    %s109 = sadd.f32 %s105, %s106
    %s110 = sadd.f32 %s109, %s107
    %s111 = sadd.f32 %s110, %s108
    %v112 = vld [vmem:[#allocation6] sm:$0xff]
    %v113 = vld [vmem:[#allocation6 + $0x8] sm:$0xff]
    %v114 = vld [vmem:[#allocation6 + $0x10] sm:$0xff]
    %v115 = vld [vmem:[#allocation6 + $0x18] sm:$0xff]
    %v116 = vld [vmem:[#allocation6 + $0x20] sm:$0xff]
    %v117 = vld [vmem:[#allocation6 + $0x28] sm:$0xff]
    %v118 = vld [vmem:[#allocation6 + $0x30] sm:$0xff]
    %v119 = vld [vmem:[#allocation6 + $0x38] sm:$0xff]
    %v120 = vld [vmem:[#allocation6 + $0x40] sm:$0xff]
    %v121 = vld [vmem:[#allocation6 + $0x48] sm:$0xff]
    %v122 = vld [vmem:[#allocation6 + $0x50] sm:$0xff]
    %v123 = vld [vmem:[#allocation6 + $0x58] sm:$0xff]
    %v124 = vld [vmem:[#allocation6 + $0x60] sm:$0xff]
    %v125 = vld [vmem:[#allocation6 + $0x68] sm:$0xff]
    %v126 = vld [vmem:[#allocation6 + $0x70] sm:$0xff]
    %v127 = vld [vmem:[#allocation6 + $0x78] sm:$0xff]
    %v128 = vld [vmem:[#allocation7] sm:$0xff]
    %v129 = vld [vmem:[#allocation7 + $0x8] sm:$0xff]
    %v130 = vld [vmem:[#allocation7 + $0x10] sm:$0xff]
    %v131 = vld [vmem:[#allocation7 + $0x18] sm:$0xff]
    %v132 = vld [vmem:[#allocation7 + $0x20] sm:$0xff]
    %v133 = vld [vmem:[#allocation7 + $0x28] sm:$0xff]
    %v134 = vld [vmem:[#allocation7 + $0x30] sm:$0xff]
    %v135 = vld [vmem:[#allocation7 + $0x38] sm:$0xff]
    %v136 = vld [vmem:[#allocation7 + $0x40] sm:$0xff]
    %v137 = vld [vmem:[#allocation7 + $0x48] sm:$0xff]
    %v138 = vld [vmem:[#allocation7 + $0x50] sm:$0xff]
    %v139 = vld [vmem:[#allocation7 + $0x58] sm:$0xff]
    %v140 = vld [vmem:[#allocation7 + $0x60] sm:$0xff]
    %v141 = vld [vmem:[#allocation7 + $0x68] sm:$0xff]
    %v142 = vld [vmem:[#allocation7 + $0x70] sm:$0xff]
    %v143 = vld [vmem:[#allocation7 + $0x78] sm:$0xff]
    %v144 = vld [vmem:[#allocation7 + $0x80] sm:$0xff]
    %v145 = vld [vmem:[#allocation7 + $0x88] sm:$0xff]
    %v146 = vld [vmem:[#allocation7 + $0x90] sm:$0xff]
    %v147 = vld [vmem:[#allocation7 + $0x98] sm:$0xff]
    %v148 = vld [vmem:[#allocation7 + $0xa0] sm:$0xff]
    %v149 = vld [vmem:[#allocation7 + $0xa8] sm:$0xff]
    %v150 = vld [vmem:[#allocation7 + $0xb0] sm:$0xff]
    %v151 = vld [vmem:[#allocation7 + $0xb8] sm:$0xff]
    %v152 = vld [vmem:[#allocation7 + $0xc0] sm:$0xff]
    %v153 = vld [vmem:[#allocation7 + $0xc8] sm:$0xff]
    %v154 = vld [vmem:[#allocation7 + $0xd0] sm:$0xff]
    %v155 = vld [vmem:[#allocation7 + $0xd8] sm:$0xff]
    %v156 = vld [vmem:[#allocation7 + $0xe0] sm:$0xff]
    %v157 = vld [vmem:[#allocation7 + $0xe8] sm:$0xff]
    %v158 = vld [vmem:[#allocation7 + $0xf0] sm:$0xff]
    %v159 = vld [vmem:[#allocation7 + $0xf8] sm:$0xff]
    %v160 = vld [vmem:[#allocation7 + $0x100] sm:$0xff]
    %v161 = vld [vmem:[#allocation7 + $0x108] sm:$0xff]
    %v162 = vld [vmem:[#allocation7 + $0x110] sm:$0xff]
    %v163 = vld [vmem:[#allocation7 + $0x118] sm:$0xff]
    %v164 = vld [vmem:[#allocation7 + $0x120] sm:$0xff]
    %v165 = vld [vmem:[#allocation7 + $0x128] sm:$0xff]
    %v166 = vld [vmem:[#allocation7 + $0x130] sm:$0xff]
    %v167 = vld [vmem:[#allocation7 + $0x138] sm:$0xff]
    %v168 = vld [vmem:[#allocation7 + $0x140] sm:$0xff]
    %v169 = vld [vmem:[#allocation7 + $0x148] sm:$0xff]
    %v170 = vld [vmem:[#allocation7 + $0x150] sm:$0xff]
    %v171 = vld [vmem:[#allocation7 + $0x158] sm:$0xff]
    %v172 = vld [vmem:[#allocation7 + $0x160] sm:$0xff]
    %v173 = vld [vmem:[#allocation7 + $0x168] sm:$0xff]
    %v174 = vld [vmem:[#allocation7 + $0x170] sm:$0xff]
    %v175 = vld [vmem:[#allocation7 + $0x178] sm:$0xff]
    %v176 = vld [vmem:[#allocation7 + $0x180] sm:$0xff]
    %v177 = vld [vmem:[#allocation7 + $0x188] sm:$0xff]
    %v178 = vld [vmem:[#allocation7 + $0x190] sm:$0xff]
    %v179 = vld [vmem:[#allocation7 + $0x198] sm:$0xff]
    %v180 = vld [vmem:[#allocation7 + $0x1a0] sm:$0xff]
    %v181 = vld [vmem:[#allocation7 + $0x1a8] sm:$0xff]
    %v182 = vld [vmem:[#allocation7 + $0x1b0] sm:$0xff]
    %v183 = vld [vmem:[#allocation7 + $0x1b8] sm:$0xff]
    %v184 = vld [vmem:[#allocation7 + $0x1c0] sm:$0xff]
    %v185 = vld [vmem:[#allocation7 + $0x1c8] sm:$0xff]
    %v186 = vld [vmem:[#allocation7 + $0x1d0] sm:$0xff]
    %v187 = vld [vmem:[#allocation7 + $0x1d8] sm:$0xff]
    %v188 = vld [vmem:[#allocation7 + $0x1e0] sm:$0xff]
    %v189 = vld [vmem:[#allocation7 + $0x1e8] sm:$0xff]
    %v190 = vld [vmem:[#allocation7 + $0x1f0] sm:$0xff]
    %v191 = vld [vmem:[#allocation7 + $0x1f8] sm:$0xff]
    %v192 = vld [vmem:[#allocation7 + $0x200] sm:$0xff]
    %v193 = vld [vmem:[#allocation7 + $0x208] sm:$0xff]
    %v194 = vld [vmem:[#allocation7 + $0x210] sm:$0xff]
    %v195 = vld [vmem:[#allocation7 + $0x218] sm:$0xff]
    %v196 = vld [vmem:[#allocation7 + $0x220] sm:$0xff]
    %v197 = vld [vmem:[#allocation7 + $0x228] sm:$0xff]
    %v198 = vld [vmem:[#allocation7 + $0x230] sm:$0xff]
    %v199 = vld [vmem:[#allocation7 + $0x238] sm:$0xff]
    %v200 = vld [vmem:[#allocation7 + $0x240] sm:$0xff]
    %v201 = vld [vmem:[#allocation7 + $0x248] sm:$0xff]
    %v202 = vld [vmem:[#allocation7 + $0x250] sm:$0xff]
    %v203 = vld [vmem:[#allocation7 + $0x258] sm:$0xff]
    %v204 = vld [vmem:[#allocation7 + $0x260] sm:$0xff]
    %v205 = vld [vmem:[#allocation7 + $0x268] sm:$0xff]
    %v206 = vld [vmem:[#allocation7 + $0x270] sm:$0xff]
    %v207 = vld [vmem:[#allocation7 + $0x278] sm:$0xff]
    %v208 = vld [vmem:[#allocation7 + $0x280] sm:$0xff]
    %v209 = vld [vmem:[#allocation7 + $0x288] sm:$0xff]
    %v210 = vld [vmem:[#allocation7 + $0x290] sm:$0xff]
    %v211 = vld [vmem:[#allocation7 + $0x298] sm:$0xff]
    %v212 = vld [vmem:[#allocation7 + $0x2a0] sm:$0xff]
    %v213 = vld [vmem:[#allocation7 + $0x2a8] sm:$0xff]
    %v214 = vld [vmem:[#allocation7 + $0x2b0] sm:$0xff]
    %v215 = vld [vmem:[#allocation7 + $0x2b8] sm:$0xff]
    %v216 = vld [vmem:[#allocation7 + $0x2c0] sm:$0xff]
    %v217 = vld [vmem:[#allocation7 + $0x2c8] sm:$0xff]
    %v218 = vld [vmem:[#allocation7 + $0x2d0] sm:$0xff]
    %v219 = vld [vmem:[#allocation7 + $0x2d8] sm:$0xff]
    %v220 = vld [vmem:[#allocation7 + $0x2e0] sm:$0xff]
    %v221 = vld [vmem:[#allocation7 + $0x2e8] sm:$0xff]
    %v222 = vld [vmem:[#allocation7 + $0x2f0] sm:$0xff]
    %v223 = vld [vmem:[#allocation7 + $0x2f8] sm:$0xff]
    %v224 = vld [vmem:[#allocation7 + $0x300] sm:$0xff]
    %v225 = vld [vmem:[#allocation7 + $0x308] sm:$0xff]
    %v226 = vld [vmem:[#allocation7 + $0x310] sm:$0xff]
    %v227 = vld [vmem:[#allocation7 + $0x318] sm:$0xff]
    %v228 = vld [vmem:[#allocation7 + $0x320] sm:$0xff]
    %v229 = vld [vmem:[#allocation7 + $0x328] sm:$0xff]
    %v230 = vld [vmem:[#allocation7 + $0x330] sm:$0xff]
    %v231 = vld [vmem:[#allocation7 + $0x338] sm:$0xff]
    %v232 = vld [vmem:[#allocation7 + $0x340] sm:$0xff]
    %v233 = vld [vmem:[#allocation7 + $0x348] sm:$0xff]
    %v234 = vld [vmem:[#allocation7 + $0x350] sm:$0xff]
    %v235 = vld [vmem:[#allocation7 + $0x358] sm:$0xff]
    %v236 = vld [vmem:[#allocation7 + $0x360] sm:$0xff]
    %v237 = vld [vmem:[#allocation7 + $0x368] sm:$0xff]
    %v238 = vld [vmem:[#allocation7 + $0x370] sm:$0xff]
    %v239 = vld [vmem:[#allocation7 + $0x378] sm:$0xff]
    %v240 = vld [vmem:[#allocation7 + $0x380] sm:$0xff]
    %v241 = vld [vmem:[#allocation7 + $0x388] sm:$0xff]
    %v242 = vld [vmem:[#allocation7 + $0x390] sm:$0xff]
    %v243 = vld [vmem:[#allocation7 + $0x398] sm:$0xff]
    %v244 = vld [vmem:[#allocation7 + $0x3a0] sm:$0xff]
    %v245 = vld [vmem:[#allocation7 + $0x3a8] sm:$0xff]
    %v246 = vld [vmem:[#allocation7 + $0x3b0] sm:$0xff]
    %v247 = vld [vmem:[#allocation7 + $0x3b8] sm:$0xff]
    %v248 = vld [vmem:[#allocation7 + $0x3c0] sm:$0xff]
    %v249 = vld [vmem:[#allocation7 + $0x3c8] sm:$0xff]
    %v250 = vld [vmem:[#allocation7 + $0x3d0] sm:$0xff]
    %v251 = vld [vmem:[#allocation7 + $0x3d8] sm:$0xff]
    %v252 = vld [vmem:[#allocation7 + $0x3e0] sm:$0xff]
    %v253 = vld [vmem:[#allocation7 + $0x3e8] sm:$0xff]
    %v254 = vld [vmem:[#allocation7 + $0x3f0] sm:$0xff]
    %v255 = vld [vmem:[#allocation7 + $0x3f8] sm:$0xff]
    %256 = vmatprep.subr.mxu0 %v129
    %257 = vmatpush1.msra.mxu0 %v128
    %258 = vmatprep.subr.mxu0 %v131
    %259 = vmatpush1.msra.mxu0 %v130
    %260 = vmatprep.subr.mxu0 %v133
    %261 = vmatpush1.msra.mxu0 %v132
    %262 = vmatprep.subr.mxu0 %v135
    %263 = vmatpush1.msra.mxu0 %v134
    %264 = vmatprep.subr.mxu0 %v137
    %265 = vmatpush1.msra.mxu0 %v136
    %266 = vmatprep.subr.mxu0 %v139
    %267 = vmatpush1.msra.mxu0 %v138
    %268 = vmatprep.subr.mxu0 %v141
    %269 = vmatpush1.msra.mxu0 %v140
    %270 = vmatprep.subr.mxu0 %v143
    %271 = vmatpush1.msra.mxu0 %v142
    %272 = vmatprep.subr.mxu0 %v145
    %273 = vmatpush1.msra.mxu0 %v144
    %274 = vmatprep.subr.mxu0 %v147
    %275 = vmatpush1.msra.mxu0 %v146
    %276 = vmatprep.subr.mxu0 %v149
    %277 = vmatpush1.msra.mxu0 %v148
    %278 = vmatprep.subr.mxu0 %v151
    %279 = vmatpush1.msra.mxu0 %v150
    %280 = vmatprep.subr.mxu0 %v153
    %281 = vmatpush1.msra.mxu0 %v152
    %282 = vmatprep.subr.mxu0 %v155
    %283 = vmatpush1.msra.mxu0 %v154
    %284 = vmatprep.subr.mxu0 %v157
    %285 = vmatpush1.msra.mxu0 %v156
    %286 = vmatprep.subr.mxu0 %v159
    %287 = vmatpush1.msra.mxu0 %v158
    %288 = vmatprep.subr.mxu0 %v161
    %289 = vmatpush1.msra.mxu0 %v160
    %290 = vmatprep.subr.mxu0 %v163
    %291 = vmatpush1.msra.mxu0 %v162
    %292 = vmatprep.subr.mxu0 %v165
    %293 = vmatpush1.msra.mxu0 %v164
    %294 = vmatprep.subr.mxu0 %v167
    %295 = vmatpush1.msra.mxu0 %v166
    %296 = vmatprep.subr.mxu0 %v169
    %297 = vmatpush1.msra.mxu0 %v168
    %298 = vmatprep.subr.mxu0 %v171
    %299 = vmatpush1.msra.mxu0 %v170
    %300 = vmatprep.subr.mxu0 %v173
    %301 = vmatpush1.msra.mxu0 %v172
    %302 = vmatprep.subr.mxu0 %v175
    %303 = vmatpush1.msra.mxu0 %v174
    %304 = vmatprep.subr.mxu0 %v177
    %305 = vmatpush1.msra.mxu0 %v176
    %306 = vmatprep.subr.mxu0 %v179
    %307 = vmatpush1.msra.mxu0 %v178
    %308 = vmatprep.subr.mxu0 %v181
    %309 = vmatpush1.msra.mxu0 %v180
    %310 = vmatprep.subr.mxu0 %v183
    %311 = vmatpush1.msra.mxu0 %v182
    %312 = vmatprep.subr.mxu0 %v185
    %313 = vmatpush1.msra.mxu0 %v184
    %314 = vmatprep.subr.mxu0 %v187
    %315 = vmatpush1.msra.mxu0 %v186
    %316 = vmatprep.subr.mxu0 %v189
    %317 = vmatpush1.msra.mxu0 %v188
    %318 = vmatprep.subr.mxu0 %v191
    %319 = vmatpush1.msra.mxu0 %v190
    %320 = vmatprep.mubr.f32.mxu0 %v113
    %321 = vmatmul.mubr.f32.gmra.mrb[0].mxu0 %v112
    %v322 = vpop.f32.mrb[0].mxu0
    %v323 = vadd.f32 0.0, %v322
    %v324 = vpop.f32.mrb[0].mxu0
    %v325 = vadd.f32 0.0, %v324
    %326 = vmatprep.mubr.f32.mxu0 %v117
    %327 = vmatmul.mubr.f32.gmra.mrb[0].mxu0 %v116
    %v328 = vpop.f32.mrb[0].mxu0
    %v329 = vadd.f32 0.0, %v328
    %v330 = vpop.f32.mrb[0].mxu0
    %v331 = vadd.f32 0.0, %v330
    %332 = vmatprep.mubr.f32.mxu0 %v121
    %333 = vmatmul.mubr.f32.gmra.mrb[0].mxu0 %v120
    %v334 = vpop.f32.mrb[0].mxu0
    %v335 = vadd.f32 0.0, %v334
    %v336 = vpop.f32.mrb[0].mxu0
    %v337 = vadd.f32 0.0, %v336
    %338 = vmatprep.mubr.f32.mxu0 %v125
    %339 = vmatmul.mubr.f32.gmra.mrb[0].mxu0 %v124
    %v340 = vpop.f32.mrb[0].mxu0
    %v341 = vadd.f32 0.0, %v340
    %v342 = vpop.f32.mrb[0].mxu0
    %v343 = vadd.f32 0.0, %v342
    %344 = vdwg.mxu0
    %345 = vmatprep.subr.mxu0 %v193
    %346 = vmatpush1.msra.mxu0 %v192
    %347 = vmatprep.subr.mxu0 %v195
    %348 = vmatpush1.msra.mxu0 %v194
    %349 = vmatprep.subr.mxu0 %v197
    %350 = vmatpush1.msra.mxu0 %v196
    %351 = vmatprep.subr.mxu0 %v199
    %352 = vmatpush1.msra.mxu0 %v198
    %353 = vmatprep.subr.mxu0 %v201
    %354 = vmatpush1.msra.mxu0 %v200
    %355 = vmatprep.subr.mxu0 %v203
    %356 = vmatpush1.msra.mxu0 %v202
    %357 = vmatprep.subr.mxu0 %v205
    %358 = vmatpush1.msra.mxu0 %v204
    %359 = vmatprep.subr.mxu0 %v207
    %360 = vmatpush1.msra.mxu0 %v206
    %361 = vmatprep.subr.mxu0 %v209
    %362 = vmatpush1.msra.mxu0 %v208
    %363 = vmatprep.subr.mxu0 %v211
    %364 = vmatpush1.msra.mxu0 %v210
    %365 = vmatprep.subr.mxu0 %v213
    %366 = vmatpush1.msra.mxu0 %v212
    %367 = vmatprep.subr.mxu0 %v215
    %368 = vmatpush1.msra.mxu0 %v214
    %369 = vmatprep.subr.mxu0 %v217
    %370 = vmatpush1.msra.mxu0 %v216
    %371 = vmatprep.subr.mxu0 %v219
    %372 = vmatpush1.msra.mxu0 %v218
    %373 = vmatprep.subr.mxu0 %v221
    %374 = vmatpush1.msra.mxu0 %v220
    %375 = vmatprep.subr.mxu0 %v223
    %376 = vmatpush1.msra.mxu0 %v222
    %377 = vmatprep.subr.mxu0 %v225
    %378 = vmatpush1.msra.mxu0 %v224
    %379 = vmatprep.subr.mxu0 %v227
    %380 = vmatpush1.msra.mxu0 %v226
    %381 = vmatprep.subr.mxu0 %v229
    %382 = vmatpush1.msra.mxu0 %v228
    %383 = vmatprep.subr.mxu0 %v231
    %384 = vmatpush1.msra.mxu0 %v230
    %385 = vmatprep.subr.mxu0 %v233
    %386 = vmatpush1.msra.mxu0 %v232
    %387 = vmatprep.subr.mxu0 %v235
    %388 = vmatpush1.msra.mxu0 %v234
    %389 = vmatprep.subr.mxu0 %v237
    %390 = vmatpush1.msra.mxu0 %v236
    %391 = vmatprep.subr.mxu0 %v239
    %392 = vmatpush1.msra.mxu0 %v238
    %393 = vmatprep.subr.mxu0 %v241
    %394 = vmatpush1.msra.mxu0 %v240
    %395 = vmatprep.subr.mxu0 %v243
    %396 = vmatpush1.msra.mxu0 %v242
    %397 = vmatprep.subr.mxu0 %v245
    %398 = vmatpush1.msra.mxu0 %v244
    %399 = vmatprep.subr.mxu0 %v247
    %400 = vmatpush1.msra.mxu0 %v246
    %401 = vmatprep.subr.mxu0 %v249
    %402 = vmatpush1.msra.mxu0 %v248
    %403 = vmatprep.subr.mxu0 %v251
    %404 = vmatpush1.msra.mxu0 %v250
    %405 = vmatprep.subr.mxu0 %v253
    %406 = vmatpush1.msra.mxu0 %v252
    %407 = vmatprep.subr.mxu0 %v255
    %408 = vmatpush1.msra.mxu0 %v254
    %409 = vmatprep.mubr.f32.mxu0 %v115
    %410 = vmatmul.mubr.f32.gmra.mrb[0].mxu0 %v114
    %v411 = vpop.f32.mrb[0].mxu0
    %v412 = vadd.f32 %v323, %v411
    %v413 = vpop.f32.mrb[0].mxu0
    %v414 = vadd.f32 %v325, %v413
    %415 = vmatprep.mubr.f32.mxu0 %v119
    %416 = vmatmul.mubr.f32.gmra.mrb[0].mxu0 %v118
    %v417 = vpop.f32.mrb[0].mxu0
    %v418 = vadd.f32 %v329, %v417
    %v419 = vpop.f32.mrb[0].mxu0
    %v420 = vadd.f32 %v331, %v419
    %421 = vmatprep.mubr.f32.mxu0 %v123
    %422 = vmatmul.mubr.f32.gmra.mrb[0].mxu0 %v122
    %v423 = vpop.f32.mrb[0].mxu0
    %v424 = vadd.f32 %v335, %v423
    %v425 = vpop.f32.mrb[0].mxu0
    %v426 = vadd.f32 %v337, %v425
    %427 = vmatprep.mubr.f32.mxu0 %v127
    %428 = vmatmul.mubr.f32.gmra.mrb[0].mxu0 %v126
    %v429 = vpop.f32.mrb[0].mxu0
    %v430 = vadd.f32 %v341, %v429
    %v431 = vpop.f32.mrb[0].mxu0
    %v432 = vadd.f32 %v343, %v431
    %433 = vdwg.mxu0
    %v434 = vld [vmem:[%s3 + $0x1] sm:$0x1]
    %v436 = vlaneseq
    %v437 = vshrl.u32 %v436, 7
    %v438 = vsub.s32 0, %v437
    %v439 = vrot.slane %v434, %v438
    %v441 = vadd.f32 %v414, %v439
    %v442 = vadd.f32 %v420, %v439
    %v443 = vadd.f32 %v426, %v439
    %v444 = vadd.f32 %v432, %v439
    %v445 = vrot.slane %v412, 4
    %v446 = vadd.f32 %v412, %v445
    %v447 = vrot.slane %v446, 2
    %v448 = vadd.f32 %v446, %v447
    %v449 = vrot.slane %v448, 1
    %v450 = vadd.f32 %v448, %v449
    %v451 = vrot.slane %v418, 4
    %v452 = vadd.f32 %v418, %v451
    %v453 = vrot.slane %v452, 2
    %v454 = vadd.f32 %v452, %v453
    %v455 = vrot.slane %v454, 1
    %v456 = vadd.f32 %v454, %v455
    %v457 = vrot.slane %v424, 4
    %v458 = vadd.f32 %v424, %v457
    %v459 = vrot.slane %v458, 2
    %v460 = vadd.f32 %v458, %v459
    %v461 = vrot.slane %v460, 1
    %v462 = vadd.f32 %v460, %v461
    %v463 = vrot.slane %v430, 4
    %v464 = vadd.f32 %v430, %v463
    %v465 = vrot.slane %v464, 2
    %v466 = vadd.f32 %v464, %v465
    %v467 = vrot.slane %v466, 1
    %v468 = vadd.f32 %v466, %v467
    %v469 = vrcp.pop 8.0
    %v470 = vmul.f32 %v450, %v469
    %v471 = vmul.f32 %v456, %v469
    %v472 = vmul.f32 %v462, %v469
    %v473 = vmul.f32 %v468, %v469
    %v474 = vmul.f32 %v412, %v412
    %v475 = vmul.f32 %v418, %v418
    %v476 = vmul.f32 %v424, %v424
    %v477 = vmul.f32 %v430, %v430
    %v478 = vrot.slane %v474, 4
    %v479 = vadd.f32 %v474, %v478
    %v480 = vrot.slane %v479, 2
    %v481 = vadd.f32 %v479, %v480
    %v482 = vrot.slane %v481, 1
    %v483 = vadd.f32 %v481, %v482
    %v484 = vrot.slane %v475, 4
    %v485 = vadd.f32 %v475, %v484
    %v486 = vrot.slane %v485, 2
    %v487 = vadd.f32 %v485, %v486
    %v488 = vrot.slane %v487, 1
    %v489 = vadd.f32 %v487, %v488
    %v490 = vrot.slane %v476, 4
    %v491 = vadd.f32 %v476, %v490
    %v492 = vrot.slane %v491, 2
    %v493 = vadd.f32 %v491, %v492
    %v494 = vrot.slane %v493, 1
    %v495 = vadd.f32 %v493, %v494
    %v496 = vrot.slane %v477, 4
    %v497 = vadd.f32 %v477, %v496
    %v498 = vrot.slane %v497, 2
    %v499 = vadd.f32 %v497, %v498
    %v500 = vrot.slane %v499, 1
    %v501 = vadd.f32 %v499, %v500
    %v502 = vmul.f32 %v483, %v469
    %v503 = vmul.f32 %v489, %v469
    %v504 = vmul.f32 %v495, %v469
    %v505 = vmul.f32 %v501, %v469
    %v506 = vmul.f32 %v470, %v470
    %v507 = vmul.f32 %v471, %v471
    %v508 = vmul.f32 %v472, %v472
    %v509 = vmul.f32 %v473, %v473
    %v510 = vsub.f32 %v502, %v506
    %v511 = vsub.f32 %v503, %v507
    %v512 = vsub.f32 %v504, %v508
    %v513 = vsub.f32 %v505, %v509
    %v514 = vmax.f32 %v510, 0.0
    %v515 = vmax.f32 %v511, 0.0
    %v516 = vmax.f32 %v512, 0.0
    %v517 = vmax.f32 %v513, 0.0
    %v518 = vadd.f32 %v514, 1e-05
    %v519 = vadd.f32 %v515, 1e-05
    %v520 = vadd.f32 %v516, 1e-05
    %v521 = vadd.f32 %v517, 1e-05
    %v522 = vrsqrt.pop %v518
    %v523 = vrsqrt.pop %v519
    %v524 = vrsqrt.pop %v520
    %v525 = vrsqrt.pop %v521
    %v526 = vld [vmem:[%s4] sm:$0x1]
    %v527 = vstv %s105
    %v528 = vmul.f32 %v527, %v526
    %v529 = vmul.f32 %v528, %v522
    %v530 = vstv %s106
    %v531 = vmul.f32 %v530, %v526
    %v532 = vmul.f32 %v531, %v523
    %v533 = vstv %s107
    %v534 = vmul.f32 %v533, %v526
    %v535 = vmul.f32 %v534, %v524
    %v536 = vstv %s108
    %v537 = vmul.f32 %v536, %v526
    %v538 = vmul.f32 %v537, %v525
    %v539 = vld [vmem:[%s5] sm:$0x1]
    %v540 = vstv %s111
    %v541 = vmul.f32 %v540, %v539
    %v542 = vmul.f32 %v529, %v470
    %v543 = vmul.f32 %v532, %v471
    %v544 = vadd.f32 %v542, %v543
    %v545 = vmul.f32 %v535, %v472
    %v546 = vadd.f32 %v544, %v545
    %v547 = vmul.f32 %v538, %v473
    %v548 = vadd.f32 %v546, %v547
    %v549 = vsub.f32 %v541, %v548
    %v551 = vlaneseq
    %v552 = vshrl.u32 %v551, 7
    %v553 = vsub.s32 0, %v552
    %v554 = vrot.slane %v529, %v553
    %v556 = vmul.f32 %v554, %v412
    %v558 = vlaneseq
    %v559 = vshrl.u32 %v558, 7
    %v560 = vsub.s32 0, %v559
    %v561 = vrot.slane %v532, %v560
    %v563 = vmul.f32 %v561, %v418
    %v564 = vadd.f32 %v556, %v563
    %v566 = vlaneseq
    %v567 = vshrl.u32 %v566, 7
    %v568 = vsub.s32 0, %v567
    %v569 = vrot.slane %v535, %v568
    %v571 = vmul.f32 %v569, %v424
    %v572 = vadd.f32 %v564, %v571
    %v574 = vlaneseq
    %v575 = vshrl.u32 %v574, 7
    %v576 = vsub.s32 0, %v575
    %v577 = vrot.slane %v538, %v576
    %v579 = vmul.f32 %v577, %v430
    %v580 = vadd.f32 %v572, %v579
    %v582 = vlaneseq
    %v583 = vshrl.u32 %v582, 7
    %v584 = vsub.s32 0, %v583
    %v585 = vrot.slane %v549, %v584
    %v587 = vadd.f32 %v580, %v585
    %v588 = vmul.f32 %v441, 2.0
    %v589 = vmul.f32 %v442, 2.0
    %v590 = vmul.f32 %v443, 2.0
    %v591 = vmul.f32 %v444, 2.0
    %v592 = vmul.f32 %v588, 1.442695
    %v593 = vpow.pop %v592
    %v594 = vmul.f32 %v589, 1.442695
    %v595 = vpow.pop %v594
    %v596 = vmul.f32 %v590, 1.442695
    %v597 = vpow.pop %v596
    %v598 = vmul.f32 %v591, 1.442695
    %v599 = vpow.pop %v598
    %v600 = vmul.f32 %v527, %v593
    %v601 = vmul.f32 %v530, %v595
    %v602 = vadd.f32 %v600, %v601
    %v603 = vmul.f32 %v533, %v597
    %v604 = vadd.f32 %v602, %v603
    %v605 = vmul.f32 %v536, %v599
    %v606 = vadd.f32 %v604, %v605
    %v607 = vrsqrt.pop %v606
    %v608 = vmul.f32 %v606, %v607
    %vm609 = vcmp.eq.f32.partialorder %v606, inf
    %v610 = vsel %vm609, %v606, %v608
    %vm611 = vcmp.eq.f32.partialorder %v606, 0.0
    %v612 = vand.u32 %v606, 2147483648
    %v613 = vsel %vm611, %v612, %v610
    %v614 = vadd.f32 %v587, %v613
    %v615 = vld [vmem:[#allocation9] sm:$0xff]
    %v616 = vld [vmem:[#allocation9 + $0x8] sm:$0xff]
    %v617 = vld [vmem:[#allocation9 + $0x10] sm:$0xff]
    %v618 = vld [vmem:[#allocation9 + $0x18] sm:$0xff]
    %v619 = vld [vmem:[#allocation9 + $0x20] sm:$0xff]
    %v620 = vld [vmem:[#allocation9 + $0x28] sm:$0xff]
    %v621 = vld [vmem:[#allocation9 + $0x30] sm:$0xff]
    %v622 = vld [vmem:[#allocation9 + $0x38] sm:$0xff]
    %v623 = vld [vmem:[#allocation9 + $0x40] sm:$0xff]
    %v624 = vld [vmem:[#allocation9 + $0x48] sm:$0xff]
    %v625 = vld [vmem:[#allocation9 + $0x50] sm:$0xff]
    %v626 = vld [vmem:[#allocation9 + $0x58] sm:$0xff]
    %v627 = vld [vmem:[#allocation9 + $0x60] sm:$0xff]
    %v628 = vld [vmem:[#allocation9 + $0x68] sm:$0xff]
    %v629 = vld [vmem:[#allocation9 + $0x70] sm:$0xff]
    %v630 = vld [vmem:[#allocation9 + $0x78] sm:$0xff]
    %v631 = vld [vmem:[#allocation9 + $0x80] sm:$0xff]
    %v632 = vld [vmem:[#allocation9 + $0x88] sm:$0xff]
    %v633 = vld [vmem:[#allocation9 + $0x90] sm:$0xff]
    %v634 = vld [vmem:[#allocation9 + $0x98] sm:$0xff]
    %v635 = vld [vmem:[#allocation9 + $0xa0] sm:$0xff]
    %v636 = vld [vmem:[#allocation9 + $0xa8] sm:$0xff]
    %v637 = vld [vmem:[#allocation9 + $0xb0] sm:$0xff]
    %v638 = vld [vmem:[#allocation9 + $0xb8] sm:$0xff]
    %v639 = vld [vmem:[#allocation9 + $0xc0] sm:$0xff]
    %v640 = vld [vmem:[#allocation9 + $0xc8] sm:$0xff]
    %v641 = vld [vmem:[#allocation9 + $0xd0] sm:$0xff]
    %v642 = vld [vmem:[#allocation9 + $0xd8] sm:$0xff]
    %v643 = vld [vmem:[#allocation9 + $0xe0] sm:$0xff]
    %v644 = vld [vmem:[#allocation9 + $0xe8] sm:$0xff]
    %v645 = vld [vmem:[#allocation9 + $0xf0] sm:$0xff]
    %v646 = vld [vmem:[#allocation9 + $0xf8] sm:$0xff]
    %v647 = vld [vmem:[#allocation9 + $0x100] sm:$0xff]
    %v648 = vld [vmem:[#allocation9 + $0x108] sm:$0xff]
    %v649 = vld [vmem:[#allocation9 + $0x110] sm:$0xff]
    %v650 = vld [vmem:[#allocation9 + $0x118] sm:$0xff]
    %v651 = vld [vmem:[#allocation9 + $0x120] sm:$0xff]
    %v652 = vld [vmem:[#allocation9 + $0x128] sm:$0xff]
    %v653 = vld [vmem:[#allocation9 + $0x130] sm:$0xff]
    %v654 = vld [vmem:[#allocation9 + $0x138] sm:$0xff]
    %v655 = vld [vmem:[#allocation9 + $0x140] sm:$0xff]
    %v656 = vld [vmem:[#allocation9 + $0x148] sm:$0xff]
    %v657 = vld [vmem:[#allocation9 + $0x150] sm:$0xff]
    %v658 = vld [vmem:[#allocation9 + $0x158] sm:$0xff]
    %v659 = vld [vmem:[#allocation9 + $0x160] sm:$0xff]
    %v660 = vld [vmem:[#allocation9 + $0x168] sm:$0xff]
    %v661 = vld [vmem:[#allocation9 + $0x170] sm:$0xff]
    %v662 = vld [vmem:[#allocation9 + $0x178] sm:$0xff]
    %v663 = vld [vmem:[#allocation9 + $0x180] sm:$0xff]
    %v664 = vld [vmem:[#allocation9 + $0x188] sm:$0xff]
    %v665 = vld [vmem:[#allocation9 + $0x190] sm:$0xff]
    %v666 = vld [vmem:[#allocation9 + $0x198] sm:$0xff]
    %v667 = vld [vmem:[#allocation9 + $0x1a0] sm:$0xff]
    %v668 = vld [vmem:[#allocation9 + $0x1a8] sm:$0xff]
    %v669 = vld [vmem:[#allocation9 + $0x1b0] sm:$0xff]
    %v670 = vld [vmem:[#allocation9 + $0x1b8] sm:$0xff]
    %v671 = vld [vmem:[#allocation9 + $0x1c0] sm:$0xff]
    %v672 = vld [vmem:[#allocation9 + $0x1c8] sm:$0xff]
    %v673 = vld [vmem:[#allocation9 + $0x1d0] sm:$0xff]
    %v674 = vld [vmem:[#allocation9 + $0x1d8] sm:$0xff]
    %v675 = vld [vmem:[#allocation9 + $0x1e0] sm:$0xff]
    %v676 = vld [vmem:[#allocation9 + $0x1e8] sm:$0xff]
    %v677 = vld [vmem:[#allocation9 + $0x1f0] sm:$0xff]
    %v678 = vld [vmem:[#allocation9 + $0x1f8] sm:$0xff]
    %679 = vmatprep.subr.mxu0 %v616
    %680 = vmatpush1.msra.mxu0 %v615
    %681 = vmatprep.subr.mxu0 %v620
    %682 = vmatpush1.msra.mxu0 %v619
    %683 = vmatprep.subr.mxu0 %v624
    %684 = vmatpush1.msra.mxu0 %v623
    %685 = vmatprep.subr.mxu0 %v628
    %686 = vmatpush1.msra.mxu0 %v627
    %687 = vmatprep.subr.mxu0 %v632
    %688 = vmatpush1.msra.mxu0 %v631
    %689 = vmatprep.subr.mxu0 %v636
    %690 = vmatpush1.msra.mxu0 %v635
    %691 = vmatprep.subr.mxu0 %v640
    %692 = vmatpush1.msra.mxu0 %v639
    %693 = vmatprep.subr.mxu0 %v644
    %694 = vmatpush1.msra.mxu0 %v643
    %695 = vmatprep.subr.mxu0 %v648
    %696 = vmatpush1.msra.mxu0 %v647
    %697 = vmatprep.subr.mxu0 %v652
    %698 = vmatpush1.msra.mxu0 %v651
    %699 = vmatprep.subr.mxu0 %v656
    %700 = vmatpush1.msra.mxu0 %v655
    %701 = vmatprep.subr.mxu0 %v660
    %702 = vmatpush1.msra.mxu0 %v659
    %703 = vmatprep.subr.mxu0 %v664
    %704 = vmatpush1.msra.mxu0 %v663
    %705 = vmatprep.subr.mxu0 %v668
    %706 = vmatpush1.msra.mxu0 %v667
    %707 = vmatprep.subr.mxu0 %v672
    %708 = vmatpush1.msra.mxu0 %v671
    %709 = vmatprep.subr.mxu0 %v676
    %710 = vmatpush1.msra.mxu0 %v675
    %711 = vmatprep.subr.mxu0 0.0
    %712 = vmatpush1.msra.mxu0 0.0
    %713 = vmatprep.subr.mxu0 0.0
    %714 = vmatpush1.msra.mxu0 0.0
    %715 = vmatprep.subr.mxu0 0.0
    %716 = vmatpush1.msra.mxu0 0.0
    %717 = vmatprep.subr.mxu0 0.0
    %718 = vmatpush1.msra.mxu0 0.0
    %719 = vmatprep.subr.mxu0 0.0
    %720 = vmatpush1.msra.mxu0 0.0
    %721 = vmatprep.subr.mxu0 0.0
    %722 = vmatpush1.msra.mxu0 0.0
    %723 = vmatprep.subr.mxu0 0.0
    %724 = vmatpush1.msra.mxu0 0.0
    %725 = vmatprep.subr.mxu0 0.0
    %726 = vmatpush1.msra.mxu0 0.0
    %727 = vmatprep.subr.mxu0 0.0
    %728 = vmatpush1.msra.mxu0 0.0
    %729 = vmatprep.subr.mxu0 0.0
    %730 = vmatpush1.msra.mxu0 0.0
    %731 = vmatprep.subr.mxu0 0.0
    %732 = vmatpush1.msra.mxu0 0.0
    %733 = vmatprep.subr.mxu0 0.0
    %734 = vmatpush1.msra.mxu0 0.0
    %735 = vmatprep.subr.mxu0 0.0
    %736 = vmatpush1.msra.mxu0 0.0
    %737 = vmatprep.subr.mxu0 0.0
    %738 = vmatpush1.msra.mxu0 0.0
    %739 = vmatprep.subr.mxu0 0.0
    %740 = vmatpush1.msra.mxu0 0.0
    %741 = vmatprep.subr.mxu0 0.0
    %742 = vmatpush1.msra.mxu0 0.0
    %743 = vmatprep.mubr.f32.mxu0 0.0
    %744 = vmatmul.mubr.f32.gmra.mrb[0].mxu0 %v614
    %v745 = vpop.f32.mrb[0].mxu0
    %v746 = vadd.f32 0.0, %v745
    %v747 = vpop.f32.mrb[0].mxu0
    %v748 = vadd.f32 0.0, %v747
    %749 = vdwg.mxu0
    %750 = vmatprep.subr.mxu0 %v618
    %751 = vmatpush1.msra.mxu0 %v617
    %752 = vmatprep.subr.mxu0 %v622
    %753 = vmatpush1.msra.mxu0 %v621
    %754 = vmatprep.subr.mxu0 %v626
    %755 = vmatpush1.msra.mxu0 %v625
    %756 = vmatprep.subr.mxu0 %v630
    %757 = vmatpush1.msra.mxu0 %v629
    %758 = vmatprep.subr.mxu0 %v634
    %759 = vmatpush1.msra.mxu0 %v633
    %760 = vmatprep.subr.mxu0 %v638
    %761 = vmatpush1.msra.mxu0 %v637
    %762 = vmatprep.subr.mxu0 %v642
    %763 = vmatpush1.msra.mxu0 %v641
    %764 = vmatprep.subr.mxu0 %v646
    %765 = vmatpush1.msra.mxu0 %v645
    %766 = vmatprep.subr.mxu0 %v650
    %767 = vmatpush1.msra.mxu0 %v649
    %768 = vmatprep.subr.mxu0 %v654
    %769 = vmatpush1.msra.mxu0 %v653
    %770 = vmatprep.subr.mxu0 %v658
    %771 = vmatpush1.msra.mxu0 %v657
    %772 = vmatprep.subr.mxu0 %v662
    %773 = vmatpush1.msra.mxu0 %v661
    %774 = vmatprep.subr.mxu0 %v666
    %775 = vmatpush1.msra.mxu0 %v665
    %776 = vmatprep.subr.mxu0 %v670
    %777 = vmatpush1.msra.mxu0 %v669
    %778 = vmatprep.subr.mxu0 %v674
    %779 = vmatpush1.msra.mxu0 %v673
    %780 = vmatprep.subr.mxu0 %v678
    %781 = vmatpush1.msra.mxu0 %v677
    %782 = vmatprep.subr.mxu0 0.0
    %783 = vmatpush1.msra.mxu0 0.0
    %784 = vmatprep.subr.mxu0 0.0
    %785 = vmatpush1.msra.mxu0 0.0
    %786 = vmatprep.subr.mxu0 0.0
    %787 = vmatpush1.msra.mxu0 0.0
    %788 = vmatprep.subr.mxu0 0.0
    %789 = vmatpush1.msra.mxu0 0.0
    %790 = vmatprep.subr.mxu0 0.0
    %791 = vmatpush1.msra.mxu0 0.0
    %792 = vmatprep.subr.mxu0 0.0
    %793 = vmatpush1.msra.mxu0 0.0
    %794 = vmatprep.subr.mxu0 0.0
    %795 = vmatpush1.msra.mxu0 0.0
    %796 = vmatprep.subr.mxu0 0.0
    %797 = vmatpush1.msra.mxu0 0.0
    %798 = vmatprep.subr.mxu0 0.0
    %799 = vmatpush1.msra.mxu0 0.0
    %800 = vmatprep.subr.mxu0 0.0
    %801 = vmatpush1.msra.mxu0 0.0
    %802 = vmatprep.subr.mxu0 0.0
    %803 = vmatpush1.msra.mxu0 0.0
    %804 = vmatprep.subr.mxu0 0.0
    %805 = vmatpush1.msra.mxu0 0.0
    %806 = vmatprep.subr.mxu0 0.0
    %807 = vmatpush1.msra.mxu0 0.0
    %808 = vmatprep.subr.mxu0 0.0
    %809 = vmatpush1.msra.mxu0 0.0
    %810 = vmatprep.subr.mxu0 0.0
    %811 = vmatpush1.msra.mxu0 0.0
    %812 = vmatprep.subr.mxu0 0.0
    %813 = vmatpush1.msra.mxu0 0.0
    %814 = vmatprep.mubr.f32.mxu0 0.0
    %815 = vmatmul.mubr.f32.gmra.mrb[0].mxu0 %v614
    %v816 = vpop.f32.mrb[0].mxu0
    %v817 = vadd.f32 0.0, %v816
    %v818 = vpop.f32.mrb[0].mxu0
    %v819 = vadd.f32 0.0, %v818
    %820 = vdwg.mxu0
    %v821 = vrot.slane %v746, 4
    %v822 = vadd.f32 %v746, %v821
    %v823 = vrot.slane %v822, 2
    %v824 = vadd.f32 %v822, %v823
    %v825 = vrot.slane %v824, 1
    %v826 = vadd.f32 %v824, %v825
    %v827 = vrot.slane %v748, 4
    %v828 = vadd.f32 %v748, %v827
    %v829 = vrot.slane %v828, 2
    %v830 = vadd.f32 %v828, %v829
    %v831 = vrot.slane %v830, 1
    %v832 = vadd.f32 %v830, %v831
    %v833 = vrot.slane %v817, 4
    %v834 = vadd.f32 %v817, %v833
    %v835 = vrot.slane %v834, 2
    %v836 = vadd.f32 %v834, %v835
    %v837 = vrot.slane %v836, 1
    %v838 = vadd.f32 %v836, %v837
    %v839 = vrot.slane %v819, 4
    %v840 = vadd.f32 %v819, %v839
    %v841 = vrot.slane %v840, 2
    %v842 = vadd.f32 %v840, %v841
    %v843 = vrot.slane %v842, 1
    %v844 = vadd.f32 %v842, %v843
    %v845 = vmul.f32 %v826, %v469
    %v846 = vmul.f32 %v832, %v469
    %v847 = vmul.f32 %v838, %v469
    %v848 = vmul.f32 %v844, %v469
    %v849 = vsub.f32 %v746, %v845
    %v850 = vsub.f32 %v748, %v846
    %v851 = vsub.f32 %v817, %v847
    %v852 = vsub.f32 %v819, %v848
    %v853 = vmul.f32 %v849, %v849
    %v854 = vmul.f32 %v850, %v850
    %v855 = vmul.f32 %v851, %v851
    %v856 = vmul.f32 %v852, %v852
    %v857 = vrot.slane %v853, 4
    %v858 = vadd.f32 %v853, %v857
    %v859 = vrot.slane %v858, 2
    %v860 = vadd.f32 %v858, %v859
    %v861 = vrot.slane %v860, 1
    %v862 = vadd.f32 %v860, %v861
    %v863 = vrot.slane %v854, 4
    %v864 = vadd.f32 %v854, %v863
    %v865 = vrot.slane %v864, 2
    %v866 = vadd.f32 %v864, %v865
    %v867 = vrot.slane %v866, 1
    %v868 = vadd.f32 %v866, %v867
    %v869 = vrot.slane %v855, 4
    %v870 = vadd.f32 %v855, %v869
    %v871 = vrot.slane %v870, 2
    %v872 = vadd.f32 %v870, %v871
    %v873 = vrot.slane %v872, 1
    %v874 = vadd.f32 %v872, %v873
    %v875 = vrot.slane %v856, 4
    %v876 = vadd.f32 %v856, %v875
    %v877 = vrot.slane %v876, 2
    %v878 = vadd.f32 %v876, %v877
    %v879 = vrot.slane %v878, 1
    %v880 = vadd.f32 %v878, %v879
    %v881 = vmul.f32 %v862, %v469
    %v882 = vmul.f32 %v868, %v469
    %v883 = vmul.f32 %v874, %v469
    %v884 = vmul.f32 %v880, %v469
    %v885 = vadd.f32 %v881, 1e-05
    %v886 = vadd.f32 %v882, 1e-05
    %v887 = vadd.f32 %v883, 1e-05
    %v888 = vadd.f32 %v884, 1e-05
    %v889 = vrsqrt.pop %v885
    %v890 = vrsqrt.pop %v886
    %v891 = vrsqrt.pop %v887
    %v892 = vrsqrt.pop %v888
    %v893 = vmul.f32 %v849, %v889
    %v894 = vmul.f32 %v850, %v890
    %v895 = vmul.f32 %v851, %v891
    %v896 = vmul.f32 %v852, %v892
    %v897 = vld [vmem:[%s7] sm:$0xf]
    %v899 = vlaneseq
    %v900 = vshrl.u32 %v899, 7
    %v901 = vsub.s32 0, %v900
    %v902 = vrot.slane %v897, %v901
    %v903 = vlaneseq
    %v904 = vshrl.u32 %v903, 7
    %v905 = vsub.s32 1, %v904
    %v906 = vrot.slane %v897, %v905
    %v907 = vlaneseq
    %v908 = vshrl.u32 %v907, 7
    %v909 = vsub.s32 2, %v908
    %v910 = vrot.slane %v897, %v909
    %v911 = vlaneseq
    %v912 = vshrl.u32 %v911, 7
    %v913 = vsub.s32 3, %v912
    %v914 = vrot.slane %v897, %v913
    %v919 = vmul.f32 %v893, %v902
    %v920 = vmul.f32 %v894, %v906
    %v921 = vmul.f32 %v895, %v910
    %v922 = vmul.f32 %v896, %v914
    %v923 = vld [vmem:[%s8] sm:$0xf]
    %v925 = vlaneseq
    %v926 = vshrl.u32 %v925, 7
    %v927 = vsub.s32 0, %v926
    %v928 = vrot.slane %v923, %v927
    %v929 = vlaneseq
    %v930 = vshrl.u32 %v929, 7
    %v931 = vsub.s32 1, %v930
    %v932 = vrot.slane %v923, %v931
    %v933 = vlaneseq
    %v934 = vshrl.u32 %v933, 7
    %v935 = vsub.s32 2, %v934
    %v936 = vrot.slane %v923, %v935
    %v937 = vlaneseq
    %v938 = vshrl.u32 %v937, 7
    %v939 = vsub.s32 3, %v938
    %v940 = vrot.slane %v923, %v939
    %v945 = vadd.f32 %v919, %v928
    %v946 = vadd.f32 %v920, %v932
    %v947 = vadd.f32 %v921, %v936
    %v948 = vadd.f32 %v922, %v940
    %v949 = vmax.f32 %v945, 0.0
    %v950 = vmax.f32 %v946, 0.0
    %v951 = vmax.f32 %v947, 0.0
    %v952 = vmax.f32 %v948, 0.0
    %v953 = vld [vmem:[#allocation10] sm:$0xff]
    %v954 = vld [vmem:[#allocation10 + $0x8] sm:$0xff]
    %v955 = vld [vmem:[#allocation10 + $0x10] sm:$0xff]
    %v956 = vld [vmem:[#allocation10 + $0x18] sm:$0xff]
    %v957 = vld [vmem:[#allocation10 + $0x20] sm:$0xff]
    %v958 = vld [vmem:[#allocation10 + $0x28] sm:$0xff]
    %v959 = vld [vmem:[#allocation10 + $0x30] sm:$0xff]
    %v960 = vld [vmem:[#allocation10 + $0x38] sm:$0xff]
    %v961 = vld [vmem:[#allocation10 + $0x40] sm:$0xff]
    %v962 = vld [vmem:[#allocation10 + $0x48] sm:$0xff]
    %v963 = vld [vmem:[#allocation10 + $0x50] sm:$0xff]
    %v964 = vld [vmem:[#allocation10 + $0x58] sm:$0xff]
    %v965 = vld [vmem:[#allocation10 + $0x60] sm:$0xff]
    %v966 = vld [vmem:[#allocation10 + $0x68] sm:$0xff]
    %v967 = vld [vmem:[#allocation10 + $0x70] sm:$0xff]
    %v968 = vld [vmem:[#allocation10 + $0x78] sm:$0xff]
    %v969 = vld [vmem:[#allocation10 + $0x80] sm:$0xff]
    %v970 = vld [vmem:[#allocation10 + $0x88] sm:$0xff]
    %v971 = vld [vmem:[#allocation10 + $0x90] sm:$0xff]
    %v972 = vld [vmem:[#allocation10 + $0x98] sm:$0xff]
    %v973 = vld [vmem:[#allocation10 + $0xa0] sm:$0xff]
    %v974 = vld [vmem:[#allocation10 + $0xa8] sm:$0xff]
    %v975 = vld [vmem:[#allocation10 + $0xb0] sm:$0xff]
    %v976 = vld [vmem:[#allocation10 + $0xb8] sm:$0xff]
    %v977 = vld [vmem:[#allocation10 + $0xc0] sm:$0xff]
    %v978 = vld [vmem:[#allocation10 + $0xc8] sm:$0xff]
    %v979 = vld [vmem:[#allocation10 + $0xd0] sm:$0xff]
    %v980 = vld [vmem:[#allocation10 + $0xd8] sm:$0xff]
    %v981 = vld [vmem:[#allocation10 + $0xe0] sm:$0xff]
    %v982 = vld [vmem:[#allocation10 + $0xe8] sm:$0xff]
    %v983 = vld [vmem:[#allocation10 + $0xf0] sm:$0xff]
    %v984 = vld [vmem:[#allocation10 + $0xf8] sm:$0xff]
    %v985 = vld [vmem:[#allocation10 + $0x100] sm:$0xff]
    %v986 = vld [vmem:[#allocation10 + $0x108] sm:$0xff]
    %v987 = vld [vmem:[#allocation10 + $0x110] sm:$0xff]
    %v988 = vld [vmem:[#allocation10 + $0x118] sm:$0xff]
    %v989 = vld [vmem:[#allocation10 + $0x120] sm:$0xff]
    %v990 = vld [vmem:[#allocation10 + $0x128] sm:$0xff]
    %v991 = vld [vmem:[#allocation10 + $0x130] sm:$0xff]
    %v992 = vld [vmem:[#allocation10 + $0x138] sm:$0xff]
    %v993 = vld [vmem:[#allocation10 + $0x140] sm:$0xff]
    %v994 = vld [vmem:[#allocation10 + $0x148] sm:$0xff]
    %v995 = vld [vmem:[#allocation10 + $0x150] sm:$0xff]
    %v996 = vld [vmem:[#allocation10 + $0x158] sm:$0xff]
    %v997 = vld [vmem:[#allocation10 + $0x160] sm:$0xff]
    %v998 = vld [vmem:[#allocation10 + $0x168] sm:$0xff]
    %v999 = vld [vmem:[#allocation10 + $0x170] sm:$0xff]
    %v1000 = vld [vmem:[#allocation10 + $0x178] sm:$0xff]
    %v1001 = vld [vmem:[#allocation10 + $0x180] sm:$0xff]
    %v1002 = vld [vmem:[#allocation10 + $0x188] sm:$0xff]
    %v1003 = vld [vmem:[#allocation10 + $0x190] sm:$0xff]
    %v1004 = vld [vmem:[#allocation10 + $0x198] sm:$0xff]
    %v1005 = vld [vmem:[#allocation10 + $0x1a0] sm:$0xff]
    %v1006 = vld [vmem:[#allocation10 + $0x1a8] sm:$0xff]
    %v1007 = vld [vmem:[#allocation10 + $0x1b0] sm:$0xff]
    %v1008 = vld [vmem:[#allocation10 + $0x1b8] sm:$0xff]
    %v1009 = vld [vmem:[#allocation10 + $0x1c0] sm:$0xff]
    %v1010 = vld [vmem:[#allocation10 + $0x1c8] sm:$0xff]
    %v1011 = vld [vmem:[#allocation10 + $0x1d0] sm:$0xff]
    %v1012 = vld [vmem:[#allocation10 + $0x1d8] sm:$0xff]
    %v1013 = vld [vmem:[#allocation10 + $0x1e0] sm:$0xff]
    %v1014 = vld [vmem:[#allocation10 + $0x1e8] sm:$0xff]
    %v1015 = vld [vmem:[#allocation10 + $0x1f0] sm:$0xff]
    %v1016 = vld [vmem:[#allocation10 + $0x1f8] sm:$0xff]
    %v1017 = vld [vmem:[#allocation10 + $0x200] sm:$0xff]
    %v1018 = vld [vmem:[#allocation10 + $0x208] sm:$0xff]
    %v1019 = vld [vmem:[#allocation10 + $0x210] sm:$0xff]
    %v1020 = vld [vmem:[#allocation10 + $0x218] sm:$0xff]
    %v1021 = vld [vmem:[#allocation10 + $0x220] sm:$0xff]
    %v1022 = vld [vmem:[#allocation10 + $0x228] sm:$0xff]
    %v1023 = vld [vmem:[#allocation10 + $0x230] sm:$0xff]
    %v1024 = vld [vmem:[#allocation10 + $0x238] sm:$0xff]
    %v1025 = vld [vmem:[#allocation10 + $0x240] sm:$0xff]
    %v1026 = vld [vmem:[#allocation10 + $0x248] sm:$0xff]
    %v1027 = vld [vmem:[#allocation10 + $0x250] sm:$0xff]
    %v1028 = vld [vmem:[#allocation10 + $0x258] sm:$0xff]
    %v1029 = vld [vmem:[#allocation10 + $0x260] sm:$0xff]
    %v1030 = vld [vmem:[#allocation10 + $0x268] sm:$0xff]
    %v1031 = vld [vmem:[#allocation10 + $0x270] sm:$0xff]
    %v1032 = vld [vmem:[#allocation10 + $0x278] sm:$0xff]
    %v1033 = vld [vmem:[#allocation10 + $0x280] sm:$0xff]
    %v1034 = vld [vmem:[#allocation10 + $0x288] sm:$0xff]
    %v1035 = vld [vmem:[#allocation10 + $0x290] sm:$0xff]
    %v1036 = vld [vmem:[#allocation10 + $0x298] sm:$0xff]
    %v1037 = vld [vmem:[#allocation10 + $0x2a0] sm:$0xff]
    %v1038 = vld [vmem:[#allocation10 + $0x2a8] sm:$0xff]
    %v1039 = vld [vmem:[#allocation10 + $0x2b0] sm:$0xff]
    %v1040 = vld [vmem:[#allocation10 + $0x2b8] sm:$0xff]
    %v1041 = vld [vmem:[#allocation10 + $0x2c0] sm:$0xff]
    %v1042 = vld [vmem:[#allocation10 + $0x2c8] sm:$0xff]
    %v1043 = vld [vmem:[#allocation10 + $0x2d0] sm:$0xff]
    %v1044 = vld [vmem:[#allocation10 + $0x2d8] sm:$0xff]
    %v1045 = vld [vmem:[#allocation10 + $0x2e0] sm:$0xff]
    %v1046 = vld [vmem:[#allocation10 + $0x2e8] sm:$0xff]
    %v1047 = vld [vmem:[#allocation10 + $0x2f0] sm:$0xff]
    %v1048 = vld [vmem:[#allocation10 + $0x2f8] sm:$0xff]
    %v1049 = vld [vmem:[#allocation10 + $0x300] sm:$0xff]
    %v1050 = vld [vmem:[#allocation10 + $0x308] sm:$0xff]
    %v1051 = vld [vmem:[#allocation10 + $0x310] sm:$0xff]
    %v1052 = vld [vmem:[#allocation10 + $0x318] sm:$0xff]
    %v1053 = vld [vmem:[#allocation10 + $0x320] sm:$0xff]
    %v1054 = vld [vmem:[#allocation10 + $0x328] sm:$0xff]
    %v1055 = vld [vmem:[#allocation10 + $0x330] sm:$0xff]
    %v1056 = vld [vmem:[#allocation10 + $0x338] sm:$0xff]
    %v1057 = vld [vmem:[#allocation10 + $0x340] sm:$0xff]
    %v1058 = vld [vmem:[#allocation10 + $0x348] sm:$0xff]
    %v1059 = vld [vmem:[#allocation10 + $0x350] sm:$0xff]
    %v1060 = vld [vmem:[#allocation10 + $0x358] sm:$0xff]
    %v1061 = vld [vmem:[#allocation10 + $0x360] sm:$0xff]
    %v1062 = vld [vmem:[#allocation10 + $0x368] sm:$0xff]
    %v1063 = vld [vmem:[#allocation10 + $0x370] sm:$0xff]
    %v1064 = vld [vmem:[#allocation10 + $0x378] sm:$0xff]
    %v1065 = vld [vmem:[#allocation10 + $0x380] sm:$0xff]
    %v1066 = vld [vmem:[#allocation10 + $0x388] sm:$0xff]
    %v1067 = vld [vmem:[#allocation10 + $0x390] sm:$0xff]
    %v1068 = vld [vmem:[#allocation10 + $0x398] sm:$0xff]
    %v1069 = vld [vmem:[#allocation10 + $0x3a0] sm:$0xff]
    %v1070 = vld [vmem:[#allocation10 + $0x3a8] sm:$0xff]
    %v1071 = vld [vmem:[#allocation10 + $0x3b0] sm:$0xff]
    %v1072 = vld [vmem:[#allocation10 + $0x3b8] sm:$0xff]
    %v1073 = vld [vmem:[#allocation10 + $0x3c0] sm:$0xff]
    %v1074 = vld [vmem:[#allocation10 + $0x3c8] sm:$0xff]
    %v1075 = vld [vmem:[#allocation10 + $0x3d0] sm:$0xff]
    %v1076 = vld [vmem:[#allocation10 + $0x3d8] sm:$0xff]
    %v1077 = vld [vmem:[#allocation10 + $0x3e0] sm:$0xff]
    %v1078 = vld [vmem:[#allocation10 + $0x3e8] sm:$0xff]
    %v1079 = vld [vmem:[#allocation10 + $0x3f0] sm:$0xff]
    %v1080 = vld [vmem:[#allocation10 + $0x3f8] sm:$0xff]
    %v1081 = vld [vmem:[#allocation10 + $0x400] sm:$0xff]
    %v1082 = vld [vmem:[#allocation10 + $0x408] sm:$0xff]
    %v1083 = vld [vmem:[#allocation10 + $0x410] sm:$0xff]
    %v1084 = vld [vmem:[#allocation10 + $0x418] sm:$0xff]
    %v1085 = vld [vmem:[#allocation10 + $0x420] sm:$0xff]
    %v1086 = vld [vmem:[#allocation10 + $0x428] sm:$0xff]
    %v1087 = vld [vmem:[#allocation10 + $0x430] sm:$0xff]
    %v1088 = vld [vmem:[#allocation10 + $0x438] sm:$0xff]
    %v1089 = vld [vmem:[#allocation10 + $0x440] sm:$0xff]
    %v1090 = vld [vmem:[#allocation10 + $0x448] sm:$0xff]
    %v1091 = vld [vmem:[#allocation10 + $0x450] sm:$0xff]
    %v1092 = vld [vmem:[#allocation10 + $0x458] sm:$0xff]
    %v1093 = vld [vmem:[#allocation10 + $0x460] sm:$0xff]
    %v1094 = vld [vmem:[#allocation10 + $0x468] sm:$0xff]
    %v1095 = vld [vmem:[#allocation10 + $0x470] sm:$0xff]
    %v1096 = vld [vmem:[#allocation10 + $0x478] sm:$0xff]
    %v1097 = vld [vmem:[#allocation10 + $0x480] sm:$0xff]
    %v1098 = vld [vmem:[#allocation10 + $0x488] sm:$0xff]
    %v1099 = vld [vmem:[#allocation10 + $0x490] sm:$0xff]
    %v1100 = vld [vmem:[#allocation10 + $0x498] sm:$0xff]
    %v1101 = vld [vmem:[#allocation10 + $0x4a0] sm:$0xff]
    %v1102 = vld [vmem:[#allocation10 + $0x4a8] sm:$0xff]
    %v1103 = vld [vmem:[#allocation10 + $0x4b0] sm:$0xff]
    %v1104 = vld [vmem:[#allocation10 + $0x4b8] sm:$0xff]
    %v1105 = vld [vmem:[#allocation10 + $0x4c0] sm:$0xff]
    %v1106 = vld [vmem:[#allocation10 + $0x4c8] sm:$0xff]
    %v1107 = vld [vmem:[#allocation10 + $0x4d0] sm:$0xff]
    %v1108 = vld [vmem:[#allocation10 + $0x4d8] sm:$0xff]
    %v1109 = vld [vmem:[#allocation10 + $0x4e0] sm:$0xff]
    %v1110 = vld [vmem:[#allocation10 + $0x4e8] sm:$0xff]
    %v1111 = vld [vmem:[#allocation10 + $0x4f0] sm:$0xff]
    %v1112 = vld [vmem:[#allocation10 + $0x4f8] sm:$0xff]
    %v1113 = vld [vmem:[#allocation10 + $0x500] sm:$0xff]
    %v1114 = vld [vmem:[#allocation10 + $0x508] sm:$0xff]
    %v1115 = vld [vmem:[#allocation10 + $0x510] sm:$0xff]
    %v1116 = vld [vmem:[#allocation10 + $0x518] sm:$0xff]
    %v1117 = vld [vmem:[#allocation10 + $0x520] sm:$0xff]
    %v1118 = vld [vmem:[#allocation10 + $0x528] sm:$0xff]
    %v1119 = vld [vmem:[#allocation10 + $0x530] sm:$0xff]
    %v1120 = vld [vmem:[#allocation10 + $0x538] sm:$0xff]
    %v1121 = vld [vmem:[#allocation10 + $0x540] sm:$0xff]
    %v1122 = vld [vmem:[#allocation10 + $0x548] sm:$0xff]
    %v1123 = vld [vmem:[#allocation10 + $0x550] sm:$0xff]
    %v1124 = vld [vmem:[#allocation10 + $0x558] sm:$0xff]
    %v1125 = vld [vmem:[#allocation10 + $0x560] sm:$0xff]
    %v1126 = vld [vmem:[#allocation10 + $0x568] sm:$0xff]
    %v1127 = vld [vmem:[#allocation10 + $0x570] sm:$0xff]
    %v1128 = vld [vmem:[#allocation10 + $0x578] sm:$0xff]
    %v1129 = vld [vmem:[#allocation10 + $0x580] sm:$0xff]
    %v1130 = vld [vmem:[#allocation10 + $0x588] sm:$0xff]
    %v1131 = vld [vmem:[#allocation10 + $0x590] sm:$0xff]
    %v1132 = vld [vmem:[#allocation10 + $0x598] sm:$0xff]
    %v1133 = vld [vmem:[#allocation10 + $0x5a0] sm:$0xff]
    %v1134 = vld [vmem:[#allocation10 + $0x5a8] sm:$0xff]
    %v1135 = vld [vmem:[#allocation10 + $0x5b0] sm:$0xff]
    %v1136 = vld [vmem:[#allocation10 + $0x5b8] sm:$0xff]
    %v1137 = vld [vmem:[#allocation10 + $0x5c0] sm:$0xff]
    %v1138 = vld [vmem:[#allocation10 + $0x5c8] sm:$0xff]
    %v1139 = vld [vmem:[#allocation10 + $0x5d0] sm:$0xff]
    %v1140 = vld [vmem:[#allocation10 + $0x5d8] sm:$0xff]
    %v1141 = vld [vmem:[#allocation10 + $0x5e0] sm:$0xff]
    %v1142 = vld [vmem:[#allocation10 + $0x5e8] sm:$0xff]
    %v1143 = vld [vmem:[#allocation10 + $0x5f0] sm:$0xff]
    %v1144 = vld [vmem:[#allocation10 + $0x5f8] sm:$0xff]
    %v1145 = vld [vmem:[#allocation10 + $0x600] sm:$0xff]
    %v1146 = vld [vmem:[#allocation10 + $0x608] sm:$0xff]
    %v1147 = vld [vmem:[#allocation10 + $0x610] sm:$0xff]
    %v1148 = vld [vmem:[#allocation10 + $0x618] sm:$0xff]
    %v1149 = vld [vmem:[#allocation10 + $0x620] sm:$0xff]
    %v1150 = vld [vmem:[#allocation10 + $0x628] sm:$0xff]
    %v1151 = vld [vmem:[#allocation10 + $0x630] sm:$0xff]
    %v1152 = vld [vmem:[#allocation10 + $0x638] sm:$0xff]
    %v1153 = vld [vmem:[#allocation10 + $0x640] sm:$0xff]
    %v1154 = vld [vmem:[#allocation10 + $0x648] sm:$0xff]
    %v1155 = vld [vmem:[#allocation10 + $0x650] sm:$0xff]
    %v1156 = vld [vmem:[#allocation10 + $0x658] sm:$0xff]
    %v1157 = vld [vmem:[#allocation10 + $0x660] sm:$0xff]
    %v1158 = vld [vmem:[#allocation10 + $0x668] sm:$0xff]
    %v1159 = vld [vmem:[#allocation10 + $0x670] sm:$0xff]
    %v1160 = vld [vmem:[#allocation10 + $0x678] sm:$0xff]
    %v1161 = vld [vmem:[#allocation10 + $0x680] sm:$0xff]
    %v1162 = vld [vmem:[#allocation10 + $0x688] sm:$0xff]
    %v1163 = vld [vmem:[#allocation10 + $0x690] sm:$0xff]
    %v1164 = vld [vmem:[#allocation10 + $0x698] sm:$0xff]
    %v1165 = vld [vmem:[#allocation10 + $0x6a0] sm:$0xff]
    %v1166 = vld [vmem:[#allocation10 + $0x6a8] sm:$0xff]
    %v1167 = vld [vmem:[#allocation10 + $0x6b0] sm:$0xff]
    %v1168 = vld [vmem:[#allocation10 + $0x6b8] sm:$0xff]
    %v1169 = vld [vmem:[#allocation10 + $0x6c0] sm:$0xff]
    %v1170 = vld [vmem:[#allocation10 + $0x6c8] sm:$0xff]
    %v1171 = vld [vmem:[#allocation10 + $0x6d0] sm:$0xff]
    %v1172 = vld [vmem:[#allocation10 + $0x6d8] sm:$0xff]
    %v1173 = vld [vmem:[#allocation10 + $0x6e0] sm:$0xff]
    %v1174 = vld [vmem:[#allocation10 + $0x6e8] sm:$0xff]
    %v1175 = vld [vmem:[#allocation10 + $0x6f0] sm:$0xff]
    %v1176 = vld [vmem:[#allocation10 + $0x6f8] sm:$0xff]
    %v1177 = vld [vmem:[#allocation10 + $0x700] sm:$0xff]
    %v1178 = vld [vmem:[#allocation10 + $0x708] sm:$0xff]
    %v1179 = vld [vmem:[#allocation10 + $0x710] sm:$0xff]
    %v1180 = vld [vmem:[#allocation10 + $0x718] sm:$0xff]
    %v1181 = vld [vmem:[#allocation10 + $0x720] sm:$0xff]
    %v1182 = vld [vmem:[#allocation10 + $0x728] sm:$0xff]
    %v1183 = vld [vmem:[#allocation10 + $0x730] sm:$0xff]
    %v1184 = vld [vmem:[#allocation10 + $0x738] sm:$0xff]
    %v1185 = vld [vmem:[#allocation10 + $0x740] sm:$0xff]
    %v1186 = vld [vmem:[#allocation10 + $0x748] sm:$0xff]
    %v1187 = vld [vmem:[#allocation10 + $0x750] sm:$0xff]
    %v1188 = vld [vmem:[#allocation10 + $0x758] sm:$0xff]
    %v1189 = vld [vmem:[#allocation10 + $0x760] sm:$0xff]
    %v1190 = vld [vmem:[#allocation10 + $0x768] sm:$0xff]
    %v1191 = vld [vmem:[#allocation10 + $0x770] sm:$0xff]
    %v1192 = vld [vmem:[#allocation10 + $0x778] sm:$0xff]
    %v1193 = vld [vmem:[#allocation10 + $0x780] sm:$0xff]
    %v1194 = vld [vmem:[#allocation10 + $0x788] sm:$0xff]
    %v1195 = vld [vmem:[#allocation10 + $0x790] sm:$0xff]
    %v1196 = vld [vmem:[#allocation10 + $0x798] sm:$0xff]
    %v1197 = vld [vmem:[#allocation10 + $0x7a0] sm:$0xff]
    %v1198 = vld [vmem:[#allocation10 + $0x7a8] sm:$0xff]
    %v1199 = vld [vmem:[#allocation10 + $0x7b0] sm:$0xff]
    %v1200 = vld [vmem:[#allocation10 + $0x7b8] sm:$0xff]
    %v1201 = vld [vmem:[#allocation10 + $0x7c0] sm:$0xff]
    %v1202 = vld [vmem:[#allocation10 + $0x7c8] sm:$0xff]
    %v1203 = vld [vmem:[#allocation10 + $0x7d0] sm:$0xff]
    %v1204 = vld [vmem:[#allocation10 + $0x7d8] sm:$0xff]
    %v1205 = vld [vmem:[#allocation10 + $0x7e0] sm:$0xff]
    %v1206 = vld [vmem:[#allocation10 + $0x7e8] sm:$0xff]
    %v1207 = vld [vmem:[#allocation10 + $0x7f0] sm:$0xff]
    %v1208 = vld [vmem:[#allocation10 + $0x7f8] sm:$0xff]
    %v1209 = vld [vmem:[%s10] sm:$0xf]
    %v1211 = vlaneseq
    %v1212 = vshrl.u32 %v1211, 7
    %v1213 = vsub.s32 0, %v1212
    %v1214 = vrot.slane %v1209, %v1213
    %v1215 = vlaneseq
    %v1216 = vshrl.u32 %v1215, 7
    %v1217 = vsub.s32 1, %v1216
    %v1218 = vrot.slane %v1209, %v1217
    %v1219 = vlaneseq
    %v1220 = vshrl.u32 %v1219, 7
    %v1221 = vsub.s32 2, %v1220
    %v1222 = vrot.slane %v1209, %v1221
    %v1223 = vlaneseq
    %v1224 = vshrl.u32 %v1223, 7
    %v1225 = vsub.s32 3, %v1224
    %v1226 = vrot.slane %v1209, %v1225
    %1231 = vmatprep.subr.mxu0 %v954
    %1232 = vmatpush1.msra.mxu0 %v953
    %1233 = vmatprep.subr.mxu0 %v958
    %1234 = vmatpush1.msra.mxu0 %v957
    %1235 = vmatprep.subr.mxu0 %v962
    %1236 = vmatpush1.msra.mxu0 %v961
    %1237 = vmatprep.subr.mxu0 %v966
    %1238 = vmatpush1.msra.mxu0 %v965
    %1239 = vmatprep.subr.mxu0 %v970
    %1240 = vmatpush1.msra.mxu0 %v969
    %1241 = vmatprep.subr.mxu0 %v974
    %1242 = vmatpush1.msra.mxu0 %v973
    %1243 = vmatprep.subr.mxu0 %v978
    %1244 = vmatpush1.msra.mxu0 %v977
    %1245 = vmatprep.subr.mxu0 %v982
    %1246 = vmatpush1.msra.mxu0 %v981
    %1247 = vmatprep.subr.mxu0 %v986
    %1248 = vmatpush1.msra.mxu0 %v985
    %1249 = vmatprep.subr.mxu0 %v990
    %1250 = vmatpush1.msra.mxu0 %v989
    %1251 = vmatprep.subr.mxu0 %v994
    %1252 = vmatpush1.msra.mxu0 %v993
    %1253 = vmatprep.subr.mxu0 %v998
    %1254 = vmatpush1.msra.mxu0 %v997
    %1255 = vmatprep.subr.mxu0 %v1002
    %1256 = vmatpush1.msra.mxu0 %v1001
    %1257 = vmatprep.subr.mxu0 %v1006
    %1258 = vmatpush1.msra.mxu0 %v1005
    %1259 = vmatprep.subr.mxu0 %v1010
    %1260 = vmatpush1.msra.mxu0 %v1009
    %1261 = vmatprep.subr.mxu0 %v1014
    %1262 = vmatpush1.msra.mxu0 %v1013
    %1263 = vmatprep.subr.mxu0 %v1018
    %1264 = vmatpush1.msra.mxu0 %v1017
    %1265 = vmatprep.subr.mxu0 %v1022
    %1266 = vmatpush1.msra.mxu0 %v1021
    %1267 = vmatprep.subr.mxu0 %v1026
    %1268 = vmatpush1.msra.mxu0 %v1025
    %1269 = vmatprep.subr.mxu0 %v1030
    %1270 = vmatpush1.msra.mxu0 %v1029
    %1271 = vmatprep.subr.mxu0 %v1034
    %1272 = vmatpush1.msra.mxu0 %v1033
    %1273 = vmatprep.subr.mxu0 %v1038
    %1274 = vmatpush1.msra.mxu0 %v1037
    %1275 = vmatprep.subr.mxu0 %v1042
    %1276 = vmatpush1.msra.mxu0 %v1041
    %1277 = vmatprep.subr.mxu0 %v1046
    %1278 = vmatpush1.msra.mxu0 %v1045
    %1279 = vmatprep.subr.mxu0 %v1050
    %1280 = vmatpush1.msra.mxu0 %v1049
    %1281 = vmatprep.subr.mxu0 %v1054
    %1282 = vmatpush1.msra.mxu0 %v1053
    %1283 = vmatprep.subr.mxu0 %v1058
    %1284 = vmatpush1.msra.mxu0 %v1057
    %1285 = vmatprep.subr.mxu0 %v1062
    %1286 = vmatpush1.msra.mxu0 %v1061
    %1287 = vmatprep.subr.mxu0 %v1066
    %1288 = vmatpush1.msra.mxu0 %v1065
    %1289 = vmatprep.subr.mxu0 %v1070
    %1290 = vmatpush1.msra.mxu0 %v1069
    %1291 = vmatprep.subr.mxu0 %v1074
    %1292 = vmatpush1.msra.mxu0 %v1073
    %1293 = vmatprep.subr.mxu0 %v1078
    %1294 = vmatpush1.msra.mxu0 %v1077
    %1295 = vmatprep.mubr.f32.mxu0 %v950
    %1296 = vmatmul.mubr.f32.gmra.mrb[0].mxu0 %v949
    %v1297 = vpop.f32.mrb[0].mxu0
    %v1298 = vadd.f32 %v1214, %v1297
    %v1299 = vpop.f32.mrb[0].mxu0
    %v1300 = vadd.f32 %v1218, %v1299
    %1301 = vdwg.mxu0
    %1302 = vmatprep.subr.mxu0 %v1082
    %1303 = vmatpush1.msra.mxu0 %v1081
    %1304 = vmatprep.subr.mxu0 %v1086
    %1305 = vmatpush1.msra.mxu0 %v1085
    %1306 = vmatprep.subr.mxu0 %v1090
    %1307 = vmatpush1.msra.mxu0 %v1089
    %1308 = vmatprep.subr.mxu0 %v1094
    %1309 = vmatpush1.msra.mxu0 %v1093
    %1310 = vmatprep.subr.mxu0 %v1098
    %1311 = vmatpush1.msra.mxu0 %v1097
    %1312 = vmatprep.subr.mxu0 %v1102
    %1313 = vmatpush1.msra.mxu0 %v1101
    %1314 = vmatprep.subr.mxu0 %v1106
    %1315 = vmatpush1.msra.mxu0 %v1105
    %1316 = vmatprep.subr.mxu0 %v1110
    %1317 = vmatpush1.msra.mxu0 %v1109
    %1318 = vmatprep.subr.mxu0 %v1114
    %1319 = vmatpush1.msra.mxu0 %v1113
    %1320 = vmatprep.subr.mxu0 %v1118
    %1321 = vmatpush1.msra.mxu0 %v1117
    %1322 = vmatprep.subr.mxu0 %v1122
    %1323 = vmatpush1.msra.mxu0 %v1121
    %1324 = vmatprep.subr.mxu0 %v1126
    %1325 = vmatpush1.msra.mxu0 %v1125
    %1326 = vmatprep.subr.mxu0 %v1130
    %1327 = vmatpush1.msra.mxu0 %v1129
    %1328 = vmatprep.subr.mxu0 %v1134
    %1329 = vmatpush1.msra.mxu0 %v1133
    %1330 = vmatprep.subr.mxu0 %v1138
    %1331 = vmatpush1.msra.mxu0 %v1137
    %1332 = vmatprep.subr.mxu0 %v1142
    %1333 = vmatpush1.msra.mxu0 %v1141
    %1334 = vmatprep.subr.mxu0 %v1146
    %1335 = vmatpush1.msra.mxu0 %v1145
    %1336 = vmatprep.subr.mxu0 %v1150
    %1337 = vmatpush1.msra.mxu0 %v1149
    %1338 = vmatprep.subr.mxu0 %v1154
    %1339 = vmatpush1.msra.mxu0 %v1153
    %1340 = vmatprep.subr.mxu0 %v1158
    %1341 = vmatpush1.msra.mxu0 %v1157
    %1342 = vmatprep.subr.mxu0 %v1162
    %1343 = vmatpush1.msra.mxu0 %v1161
    %1344 = vmatprep.subr.mxu0 %v1166
    %1345 = vmatpush1.msra.mxu0 %v1165
    %1346 = vmatprep.subr.mxu0 %v1170
    %1347 = vmatpush1.msra.mxu0 %v1169
    %1348 = vmatprep.subr.mxu0 %v1174
    %1349 = vmatpush1.msra.mxu0 %v1173
    %1350 = vmatprep.subr.mxu0 %v1178
    %1351 = vmatpush1.msra.mxu0 %v1177
    %1352 = vmatprep.subr.mxu0 %v1182
    %1353 = vmatpush1.msra.mxu0 %v1181
    %1354 = vmatprep.subr.mxu0 %v1186
    %1355 = vmatpush1.msra.mxu0 %v1185
    %1356 = vmatprep.subr.mxu0 %v1190
    %1357 = vmatpush1.msra.mxu0 %v1189
    %1358 = vmatprep.subr.mxu0 %v1194
    %1359 = vmatpush1.msra.mxu0 %v1193
    %1360 = vmatprep.subr.mxu0 %v1198
    %1361 = vmatpush1.msra.mxu0 %v1197
    %1362 = vmatprep.subr.mxu0 %v1202
    %1363 = vmatpush1.msra.mxu0 %v1201
    %1364 = vmatprep.subr.mxu0 %v1206
    %1365 = vmatpush1.msra.mxu0 %v1205
    %1366 = vmatprep.mubr.f32.mxu0 %v952
    %1367 = vmatmul.mubr.f32.gmra.mrb[0].mxu0 %v951
    %v1368 = vpop.f32.mrb[0].mxu0
    %v1369 = vadd.f32 %v1298, %v1368
    %v1370 = vpop.f32.mrb[0].mxu0
    %v1371 = vadd.f32 %v1300, %v1370
    %1372 = vdwg.mxu0
    %1373 = vmatprep.subr.mxu0 %v956
    %1374 = vmatpush1.msra.mxu0 %v955
    %1375 = vmatprep.subr.mxu0 %v960
    %1376 = vmatpush1.msra.mxu0 %v959
    %1377 = vmatprep.subr.mxu0 %v964
    %1378 = vmatpush1.msra.mxu0 %v963
    %1379 = vmatprep.subr.mxu0 %v968
    %1380 = vmatpush1.msra.mxu0 %v967
    %1381 = vmatprep.subr.mxu0 %v972
    %1382 = vmatpush1.msra.mxu0 %v971
    %1383 = vmatprep.subr.mxu0 %v976
    %1384 = vmatpush1.msra.mxu0 %v975
    %1385 = vmatprep.subr.mxu0 %v980
    %1386 = vmatpush1.msra.mxu0 %v979
    %1387 = vmatprep.subr.mxu0 %v984
    %1388 = vmatpush1.msra.mxu0 %v983
    %1389 = vmatprep.subr.mxu0 %v988
    %1390 = vmatpush1.msra.mxu0 %v987
    %1391 = vmatprep.subr.mxu0 %v992
    %1392 = vmatpush1.msra.mxu0 %v991
    %1393 = vmatprep.subr.mxu0 %v996
    %1394 = vmatpush1.msra.mxu0 %v995
    %1395 = vmatprep.subr.mxu0 %v1000
    %1396 = vmatpush1.msra.mxu0 %v999
    %1397 = vmatprep.subr.mxu0 %v1004
    %1398 = vmatpush1.msra.mxu0 %v1003
    %1399 = vmatprep.subr.mxu0 %v1008
    %1400 = vmatpush1.msra.mxu0 %v1007
    %1401 = vmatprep.subr.mxu0 %v1012
    %1402 = vmatpush1.msra.mxu0 %v1011
    %1403 = vmatprep.subr.mxu0 %v1016
    %1404 = vmatpush1.msra.mxu0 %v1015
    %1405 = vmatprep.subr.mxu0 %v1020
    %1406 = vmatpush1.msra.mxu0 %v1019
    %1407 = vmatprep.subr.mxu0 %v1024
    %1408 = vmatpush1.msra.mxu0 %v1023
    %1409 = vmatprep.subr.mxu0 %v1028
    %1410 = vmatpush1.msra.mxu0 %v1027
    %1411 = vmatprep.subr.mxu0 %v1032
    %1412 = vmatpush1.msra.mxu0 %v1031
    %1413 = vmatprep.subr.mxu0 %v1036
    %1414 = vmatpush1.msra.mxu0 %v1035
    %1415 = vmatprep.subr.mxu0 %v1040
    %1416 = vmatpush1.msra.mxu0 %v1039
    %1417 = vmatprep.subr.mxu0 %v1044
    %1418 = vmatpush1.msra.mxu0 %v1043
    %1419 = vmatprep.subr.mxu0 %v1048
    %1420 = vmatpush1.msra.mxu0 %v1047
    %1421 = vmatprep.subr.mxu0 %v1052
    %1422 = vmatpush1.msra.mxu0 %v1051
    %1423 = vmatprep.subr.mxu0 %v1056
    %1424 = vmatpush1.msra.mxu0 %v1055
    %1425 = vmatprep.subr.mxu0 %v1060
    %1426 = vmatpush1.msra.mxu0 %v1059
    %1427 = vmatprep.subr.mxu0 %v1064
    %1428 = vmatpush1.msra.mxu0 %v1063
    %1429 = vmatprep.subr.mxu0 %v1068
    %1430 = vmatpush1.msra.mxu0 %v1067
    %1431 = vmatprep.subr.mxu0 %v1072
    %1432 = vmatpush1.msra.mxu0 %v1071
    %1433 = vmatprep.subr.mxu0 %v1076
    %1434 = vmatpush1.msra.mxu0 %v1075
    %1435 = vmatprep.subr.mxu0 %v1080
    %1436 = vmatpush1.msra.mxu0 %v1079
    %1437 = vmatprep.mubr.f32.mxu0 %v950
    %1438 = vmatmul.mubr.f32.gmra.mrb[0].mxu0 %v949
    %v1439 = vpop.f32.mrb[0].mxu0
    %v1440 = vadd.f32 %v1222, %v1439
    %v1441 = vpop.f32.mrb[0].mxu0
    %v1442 = vadd.f32 %v1226, %v1441
    %1443 = vdwg.mxu0
    %1444 = vmatprep.subr.mxu0 %v1084
    %1445 = vmatpush1.msra.mxu0 %v1083
    %1446 = vmatprep.subr.mxu0 %v1088
    %1447 = vmatpush1.msra.mxu0 %v1087
    %1448 = vmatprep.subr.mxu0 %v1092
    %1449 = vmatpush1.msra.mxu0 %v1091
    %1450 = vmatprep.subr.mxu0 %v1096
    %1451 = vmatpush1.msra.mxu0 %v1095
    %1452 = vmatprep.subr.mxu0 %v1100
    %1453 = vmatpush1.msra.mxu0 %v1099
    %1454 = vmatprep.subr.mxu0 %v1104
    %1455 = vmatpush1.msra.mxu0 %v1103
    %1456 = vmatprep.subr.mxu0 %v1108
    %1457 = vmatpush1.msra.mxu0 %v1107
    %1458 = vmatprep.subr.mxu0 %v1112
    %1459 = vmatpush1.msra.mxu0 %v1111
    %1460 = vmatprep.subr.mxu0 %v1116
    %1461 = vmatpush1.msra.mxu0 %v1115
    %1462 = vmatprep.subr.mxu0 %v1120
    %1463 = vmatpush1.msra.mxu0 %v1119
    %1464 = vmatprep.subr.mxu0 %v1124
    %1465 = vmatpush1.msra.mxu0 %v1123
    %1466 = vmatprep.subr.mxu0 %v1128
    %1467 = vmatpush1.msra.mxu0 %v1127
    %1468 = vmatprep.subr.mxu0 %v1132
    %1469 = vmatpush1.msra.mxu0 %v1131
    %1470 = vmatprep.subr.mxu0 %v1136
    %1471 = vmatpush1.msra.mxu0 %v1135
    %1472 = vmatprep.subr.mxu0 %v1140
    %1473 = vmatpush1.msra.mxu0 %v1139
    %1474 = vmatprep.subr.mxu0 %v1144
    %1475 = vmatpush1.msra.mxu0 %v1143
    %1476 = vmatprep.subr.mxu0 %v1148
    %1477 = vmatpush1.msra.mxu0 %v1147
    %1478 = vmatprep.subr.mxu0 %v1152
    %1479 = vmatpush1.msra.mxu0 %v1151
    %1480 = vmatprep.subr.mxu0 %v1156
    %1481 = vmatpush1.msra.mxu0 %v1155
    %1482 = vmatprep.subr.mxu0 %v1160
    %1483 = vmatpush1.msra.mxu0 %v1159
    %1484 = vmatprep.subr.mxu0 %v1164
    %1485 = vmatpush1.msra.mxu0 %v1163
    %1486 = vmatprep.subr.mxu0 %v1168
    %1487 = vmatpush1.msra.mxu0 %v1167
    %1488 = vmatprep.subr.mxu0 %v1172
    %1489 = vmatpush1.msra.mxu0 %v1171
    %1490 = vmatprep.subr.mxu0 %v1176
    %1491 = vmatpush1.msra.mxu0 %v1175
    %1492 = vmatprep.subr.mxu0 %v1180
    %1493 = vmatpush1.msra.mxu0 %v1179
    %1494 = vmatprep.subr.mxu0 %v1184
    %1495 = vmatpush1.msra.mxu0 %v1183
    %1496 = vmatprep.subr.mxu0 %v1188
    %1497 = vmatpush1.msra.mxu0 %v1187
    %1498 = vmatprep.subr.mxu0 %v1192
    %1499 = vmatpush1.msra.mxu0 %v1191
    %1500 = vmatprep.subr.mxu0 %v1196
    %1501 = vmatpush1.msra.mxu0 %v1195
    %1502 = vmatprep.subr.mxu0 %v1200
    %1503 = vmatpush1.msra.mxu0 %v1199
    %1504 = vmatprep.subr.mxu0 %v1204
    %1505 = vmatpush1.msra.mxu0 %v1203
    %1506 = vmatprep.subr.mxu0 %v1208
    %1507 = vmatpush1.msra.mxu0 %v1207
    %1508 = vmatprep.mubr.f32.mxu0 %v952
    %1509 = vmatmul.mubr.f32.gmra.mrb[0].mxu0 %v951
    %v1510 = vpop.f32.mrb[0].mxu0
    %v1511 = vadd.f32 %v1440, %v1510
    %v1512 = vpop.f32.mrb[0].mxu0
    %v1513 = vadd.f32 %v1442, %v1512
    %1514 = vdwg.mxu0
    %1515 = vst [vmem:[#allocation12] sm:$0xff] %v1369
    %1516 = vst [vmem:[#allocation12 + $0x8] sm:$0xff] %v1371
    %1517 = vst [vmem:[#allocation12 + $0x10] sm:$0xff] %v1511
    %1518 = vst [vmem:[#allocation12 + $0x18] sm:$0xff] %v1513
    // Predicated region
    $region66: #{tpu_custom_call.1} parent=1 // pred_check
      _
    $region67: #{tpu_custom_call.1} parent=1 // pred_check_branch
      %1520 = sbr.rel (0) target = $region69
    $region68: #{tpu_custom_call.1} parent=1 // pred_region
      %s1522 = ssub.s32 512, 512
      %1523 = vsyncadd [#allocation4], %s1522
      %s1525 = sshll.u32 [#allocation12], 4
      %s1526 = int_to_ptr.vmem [resolvable:$true] %s1525
      %1528 = dma.vmem_to_hbm [thread:$0]  %s1526, 512, %s11, [#allocation4]
    $region69: #{tpu_custom_call.1} parent=1 // pred_fallthru
      _
    // Predicated region
    $region70: #{tpu_custom_call.1} parent=1 // pred_check
      _
    $region71: #{tpu_custom_call.1} parent=1 // pred_check_branch
      %1530 = sbr.rel (0) target = $region73
    $region72: #{tpu_custom_call.1} parent=1 // pred_region
      %1531 = dma.done [#allocation4], 512
    $region73: #{tpu_custom_call.1} parent=1 // pred_fallthru
      _
    %1532 = vsyncpa [#allocation3], 1
    %1533 = vsyncpa [#allocation8], 1
    %1534 = vsyncpa [#allocation11], 1
    %1535 = vsyncpa [#allocation4], 1
    %1536 = vsyncpa [#allocation5], 1

</llo_original>
